<compile_context>
chip_gen: v5e
topology: v5e:2x2
jax: 0.10.0
libtpu: 0.0.40
codegen_flags: <defaults>
</compile_context>

<pallas_src>
import functools
import math

import jax
import jax.numpy as jnp
import numpy as np
from jax import lax
from jax.experimental import pallas as pl
from jax.experimental.pallas import tpu as pltpu

_LN_EPS = 1e-5          # torch nn.LayerNorm default
_MASK_SCALE = -10000.0


# --------------------------------------------------------------------------
# Kernel A: per-(batch, head-group) fused QKV projection + masked scores
#           + softmax + per-group context written lane-dense into [B, S, H].
# --------------------------------------------------------------------------
def _attn_core_kernel(x_ref, mask_ref, wqkv_ref, bqkv_ref,
                      score_ref, ctx_ref, *, scale, g, dH):
    hg = pl.program_id(1)                     # head-group index
    cdt = wqkv_ref.dtype                      # MXU operand dtype (bf16 or f32)

    x = x_ref[0].astype(cdt)                  # (S, H)
    w = wqkv_ref[hg]                          # (H, 3*g*dH)  VMEM-resident slice
    b = bqkv_ref[hg]                          # (1, 3*g*dH)  f32

    # Fused QKV projection for the whole head group, f32 accumulation.
    qkv = jnp.dot(x, w, preferred_element_type=jnp.float32) + b   # (S, 3*g*dH)

    mask_add = mask_ref[0] * _MASK_SCALE      # (1, S) f32, broadcast over rows

    ctx_parts = []
    for j in range(g):                        # static unroll over heads in group
        base = j * 3 * dH
        q = qkv[:, base:base + dH]            # (S, dH) f32
        k = qkv[:, base + dH:base + 2 * dH]   # (S, dH) f32
        v = qkv[:, base + 2 * dH:base + 3 * dH]

        # q . k^T contracting last dims (no transpose), f32 scores.
        s = lax.dot_general(q, k, (((1,), (1,)), ((), ())),
                            preferred_element_type=jnp.float32) * scale
        s = s + mask_add                      # (S, S)
        score_ref[0, j] = s.astype(score_ref.dtype)

        # numerically-stable softmax with deferred normalization
        m = jnp.max(s, axis=-1, keepdims=True)
        e = jnp.exp(s - m)                    # (S, S) f32
        denom = jnp.sum(e, axis=-1, keepdims=True)       # (S, 1)
        ctx_h = jnp.dot(e.astype(cdt), v.astype(cdt),
                        preferred_element_type=jnp.float32)      # (S, dH)
        ctx_h = ctx_h * pl.reciprocal(denom, approx=False)
        ctx_parts.append(ctx_h)

    ctx = jnp.concatenate(ctx_parts, axis=-1)            # (S, g*dH), lane-dense
    ctx_ref[0] = ctx.astype(ctx_ref.dtype)


# --------------------------------------------------------------------------
# Kernel B: full-K output projection + bias + residual + LayerNorm, per batch.
# --------------------------------------------------------------------------
def _out_proj_ln_kernel(ctx_ref, wd_ref, bd_ref, x_ref, lnw_ref, lnb_ref,
                        out_ref):
    # (S, H) @ (H, H) with f32 accumulation
    h = jnp.dot(ctx_ref[0], wd_ref[...], preferred_element_type=jnp.float32)
    h = h + bd_ref[...] + x_ref[0].astype(jnp.float32)
    mean = jnp.mean(h, axis=-1, keepdims=True)
    c = h - mean
    var = jnp.mean(c * c, axis=-1, keepdims=True)
    y = c * lax.rsqrt(var + _LN_EPS) * lnw_ref[...] + lnb_ref[...]
    out_ref[0] = y.astype(out_ref.dtype)


# --------------------------------------------------------------------------
# One-time parameter re-layout (call at model-load time, NOT per forward).
# All weights expected in x @ W layout ([in, out]); torch nn.Linear stores
# [out, in], so pass `linear.weight.T` here.
# --------------------------------------------------------------------------
def _default_head_group(num_heads, head_dim):
    # Smallest divisor g of num_heads with g*dH a multiple of 128 (lane-dense
    # ctx writes and 3*g*dH >= 384 for dH=64).  Fall back to all heads.
    for gg in range(1, num_heads + 1):
        if num_heads % gg == 0 and (gg * head_dim) % 128 == 0:
            return gg
    return num_heads


def prepare_bert_attention_params(wq, bq, wk, bk, wv, bv, wd, bd, ln_w, ln_b,
                                  num_heads, head_group_size=None,
                                  compute_dtype=jnp.bfloat16):
    H = wq.shape[0]
    assert H % num_heads == 0
    dH = H // num_heads
    g = head_group_size if head_group_size is not None else _default_head_group(num_heads, dH)
    assert num_heads % g == 0
    nG = num_heads // g

    # Fused per-group QKV weights: [nG, H, g*3*dH]; for head j in the group the
    # columns [j*3dH, j*3dH+dH) / [+dH, +2dH) / [+2dH, +3dH) are Wq/Wk/Wv.
    stk_w = jnp.stack([wq.reshape(H, num_heads, dH),
                       wk.reshape(H, num_heads, dH),
                       wv.reshape(H, num_heads, dH)], axis=2)      # [H, nH, 3, dH]
    stk_w = stk_w.reshape(H, nG, g, 3, dH)
    w_qkv = jnp.transpose(stk_w, (1, 0, 2, 3, 4)).reshape(nG, H, g * 3 * dH)

    stk_b = jnp.stack([bq.reshape(num_heads, dH),
                       bk.reshape(num_heads, dH),
                       bv.reshape(num_heads, dH)], axis=1)         # [nH, 3, dH]
    b_qkv = stk_b.reshape(nG, 1, g * 3 * dH)

    return dict(
        w_qkv=w_qkv.astype(compute_dtype),
        b_qkv=b_qkv.astype(jnp.float32),         # added to f32 accumulator
        wd=wd.astype(compute_dtype),             # [H, H], x @ W layout
        bd=bd.reshape(1, H).astype(jnp.float32),
        ln_w=ln_w.reshape(1, H).astype(jnp.float32),
        ln_b=ln_b.reshape(1, H).astype(jnp.float32),
    )


# --------------------------------------------------------------------------
# Forward wrapper
# --------------------------------------------------------------------------
@functools.partial(jax.jit, static_argnames=("num_heads", "score_dtype"))
def bert_attention(hidden_states, attn_mask, params, *, num_heads,
                   score_dtype=jnp.float32):
    """hidden_states: [B, S, H]; attn_mask: [B, S] (1.0 = padded position)."""
    B, S, H = hidden_states.shape
    dH = H // num_heads
    nG = params["w_qkv"].shape[0]
    g = num_heads // nG
    scale = 1.0 / math.sqrt(dH)
    cdt = params["w_qkv"].dtype
    c_bytes = jnp.dtype(cdt).itemsize
    x_bytes = hidden_states.dtype.itemsize
    s_bytes = jnp.dtype(score_dtype).itemsize

    mask = attn_mask.reshape(B, 1, S).astype(jnp.float32)

    # ---------------- kernel A ----------------
    flops_a = int(6 * B * S * H * H + 4 * B * S * S * H)
    bytes_a = int(B * S * H * x_bytes            # x
                  + 3 * H * H * c_bytes          # fused QKV weights (once)
                  + B * num_heads * S * S * s_bytes   # scores out
                  + B * S * H * c_bytes)         # ctx out
    score, ctx = pl.pallas_call(
        functools.partial(_attn_core_kernel, scale=scale, g=g, dH=dH),
        out_shape=(
            jax.ShapeDtypeStruct((B, num_heads, S, S), score_dtype),
            jax.ShapeDtypeStruct((B, S, H), cdt),
        ),
        grid_spec=pltpu.PrefetchScalarGridSpec(
            num_scalar_prefetch=0,
            grid=(B, nG),
            in_specs=[
                pl.BlockSpec((1, S, H), lambda b, hg: (b, 0, 0)),          # x
                pl.BlockSpec((1, 1, S), lambda b, hg: (b, 0, 0)),          # mask
                # full-extent, constant index -> VMEM-resident, DMA'd once
                pl.BlockSpec((nG, H, 3 * g * dH), lambda b, hg: (0, 0, 0)),
                pl.BlockSpec((nG, 1, 3 * g * dH), lambda b, hg: (0, 0, 0)),
            ],
            out_specs=[
                pl.BlockSpec((1, g, S, S), lambda b, hg: (b, hg, 0, 0)),   # scores
                pl.BlockSpec((1, S, g * dH), lambda b, hg: (b, 0, hg)),    # ctx [B,S,H]
            ],
        ),
        compiler_params=pltpu.CompilerParams(
            dimension_semantics=("parallel", "parallel")),
        cost_estimate=pl.CostEstimate(
            flops=flops_a,
            transcendentals=int(B * num_heads * S * S),
            bytes_accessed=bytes_a),
    )(hidden_states, mask, params["w_qkv"], params["b_qkv"])

    # ---------------- kernel B ----------------
    flops_b = int(2 * B * S * H * H)
    bytes_b = int(B * S * H * (c_bytes + 2 * x_bytes) + H * H * c_bytes)
    out = pl.pallas_call(
        _out_proj_ln_kernel,
        out_shape=jax.ShapeDtypeStruct((B, S, H), hidden_states.dtype),
        grid_spec=pltpu.PrefetchScalarGridSpec(
            num_scalar_prefetch=0,
            grid=(B,),
            in_specs=[
                pl.BlockSpec((1, S, H), lambda b: (b, 0, 0)),   # ctx (lane-dense)
                pl.BlockSpec((H, H), lambda b: (0, 0)),         # Wd (resident)
                pl.BlockSpec((1, H), lambda b: (0, 0)),         # bd
                pl.BlockSpec((1, S, H), lambda b: (b, 0, 0)),   # residual x
                pl.BlockSpec((1, H), lambda b: (0, 0)),         # ln_w
                pl.BlockSpec((1, H), lambda b: (0, 0)),         # ln_b
            ],
            out_specs=pl.BlockSpec((1, S, H), lambda b: (b, 0, 0)),
        ),
        compiler_params=pltpu.CompilerParams(
            dimension_semantics=("parallel",)),
        cost_estimate=pl.CostEstimate(
            flops=flops_b, transcendentals=int(B * S),
            bytes_accessed=bytes_b),
    )(ctx, params["wd"], params["bd"], hidden_states,
      params["ln_w"], params["ln_b"])

    return out, score


# --------------------------------------------------------------------------
# Pure-JAX reference (mirrors the torch module in eval mode)
# --------------------------------------------------------------------------
def _reference(x, mask, wq, bq, wk, bk, wv, bv, wd, bd, ln_w, ln_b, num_heads):
    B, S, H = x.shape
    dH = H // num_heads
    q = x @ wq + bq
    k = x @ wk + bk
    v = x @ wv + bv

    def split(t):
        return t.reshape(B, S, num_heads, dH).transpose(0, 2, 1, 3)

    qh, kh, vh = split(q), split(k), split(v)
    score = jnp.einsum("bhqd,bhkd->bhqk", qh, kh) / math.sqrt(dH)
    score = score + mask[:, None, None, :] * _MASK_SCALE
    prob = jax.nn.softmax(score, axis=-1)
    ctx = jnp.einsum("bhqk,bhkd->bhqd", prob, vh)
    ctx = ctx.transpose(0, 2, 1, 3).reshape(B, S, H)
    h = x + (ctx @ wd + bd)
    mean = jnp.mean(h, axis=-1, keepdims=True)
    var = jnp.mean((h - mean) ** 2, axis=-1, keepdims=True)
    out = (h - mean) * lax.rsqrt(var + _LN_EPS) * ln_w + ln_b
    return out, score


def _make_inputs(key, B, S, H):
    ks = jax.random.split(key, 12)
    x = jax.random.normal(ks[0], (B, S, H), jnp.float32)
    attn_mask = (jax.random.uniform(ks[1], (B, S)) < 0.25).astype(jnp.float32)
    wscale = 1.0 / math.sqrt(H)
    wq = jax.random.normal(ks[2], (H, H), jnp.float32) * wscale
    wk = jax.random.normal(ks[3], (H, H), jnp.float32) * wscale
    wv = jax.random.normal(ks[4], (H, H), jnp.float32) * wscale
    wd = jax.random.normal(ks[5], (H, H), jnp.float32) * wscale
    bq = 0.02 * jax.random.normal(ks[6], (H,), jnp.float32)
    bk = 0.02 * jax.random.normal(ks[7], (H,), jnp.float32)
    bv = 0.02 * jax.random.normal(ks[8], (H,), jnp.float32)
    bd = 0.02 * jax.random.normal(ks[9], (H,), jnp.float32)
    ln_w = 1.0 + 0.1 * jax.random.normal(ks[10], (H,), jnp.float32)
    ln_b = 0.1 * jax.random.normal(ks[11], (H,), jnp.float32)
    return x, attn_mask, (wq, bq, wk, bk, wv, bv, wd, bd, ln_w, ln_b)


if __name__ == "__main__":
    key = jax.random.PRNGKey(0)
    k1, k2 = jax.random.split(key)

    # Config 1: tiny shapes (B=2, S=8, H=32, nH=4, dH=8) -> single head group.
    # Config 2: (B=2, S=8, H=256, nH=4, dH=64) -> exercises g=2 head grouping
    #           and the lane-dense 128-wide ctx output blocks.
    for cfg_key, (B, S, H, NH) in ((k1, (2, 8, 32, 4)), (k2, (2, 8, 256, 4))):
        x, attn_mask, w = _make_inputs(cfg_key, B, S, H)
        wq, bq, wk, bk, wv, bv, wd, bd, ln_w, ln_b = w

        ref_out, ref_score = _reference(x, attn_mask, *w, NH)

        # ---- f32 path: tight numerical check of the kernel plumbing.
        p32 = prepare_bert_attention_params(*w, NH, compute_dtype=jnp.float32)
        out32, score32 = bert_attention(x, attn_mask, p32, num_heads=NH)
        jax.block_until_ready((out32, score32))
        np.testing.assert_allclose(np.asarray(out32), np.asarray(ref_out),
                                   rtol=2e-3, atol=2e-3)
        np.testing.assert_allclose(np.asarray(score32), np.asarray(ref_score),
                                   rtol=2e-3, atol=2e-3)

        # ---- bf16 path (default perf config: bf16 MXU operands, f32 accum,
        #      f32 softmax/LN), with bf16 score writeback to halve HBM traffic.
        pbf = prepare_bert_attention_params(*w, NH, compute_dtype=jnp.bfloat16)
        out_bf, score_bf = bert_attention(x, attn_mask, pbf, num_heads=NH,
                                          score_dtype=jnp.bfloat16)
        jax.block_until_ready((out_bf, score_bf))
        np.testing.assert_allclose(np.asarray(out_bf), np.asarray(ref_out),
                                   rtol=1e-1, atol=1e-1)
        np.testing.assert_allclose(np.asarray(score_bf.astype(jnp.float32)),
                                   np.asarray(ref_score), rtol=1e-1, atol=1e-1)

    print("KERNEL_OK")
</pallas_src>

<mosaic_0001>
module attributes {stable_mosaic.version = 11 : i64} {
  func.func @_attn_core_kernel(%arg0: i32, %arg1: i32, %arg2: memref<1x8x32xf32, #tpu.memory_space<vmem>>, %arg3: memref<1x1x8xf32, #tpu.memory_space<vmem>>, %arg4: memref<1x32x96xf32, #tpu.memory_space<vmem>>, %arg5: memref<1x1x96xf32, #tpu.memory_space<vmem>>, %arg6: memref<1x4x8x8xf32, #tpu.memory_space<vmem>>, %arg7: memref<1x8x32xf32, #tpu.memory_space<vmem>>) attributes {dimension_semantics = [#tpu.dimension_semantics<parallel>, #tpu.dimension_semantics<parallel>], iteration_bounds = array<i64: 2, 1>, scalar_prefetch = 0 : i64, scratch_operands = 0 : i64, tpu.core_type = #tpu.core_type<tc>, window_params = [{transform_indices = @transform_0, window_bounds = array<i64: 1, 8, 32>}, {transform_indices = @transform_1, window_bounds = array<i64: 1, 1, 8>}, {pipeline_mode = #tpu.pipeline_mode<synchronous>, transform_indices = @transform_2, window_bounds = array<i64: 1, 32, 96>}, {pipeline_mode = #tpu.pipeline_mode<synchronous>, transform_indices = @transform_3, window_bounds = array<i64: 1, 1, 96>}, {transform_indices = @transform_4, window_bounds = array<i64: 1, 4, 8, 8>}, {transform_indices = @transform_5, window_bounds = array<i64: 1, 8, 32>}]} {
    %c0 = arith.constant 0 : index
    %c0_0 = arith.constant 0 : index
    %c0_1 = arith.constant 0 : index
    %0 = vector.load %arg2[%c0, %c0_0, %c0_1] : memref<1x8x32xf32, #tpu.memory_space<vmem>>, vector<1x8x32xf32>
    %1 = vector.shape_cast %0 : vector<1x8x32xf32> to vector<8x32xf32>
    %2 = arith.index_cast %arg1 : i32 to index
    %c0_2 = arith.constant 0 : index
    %c0_3 = arith.constant 0 : index
    %3 = vector.load %arg4[%2, %c0_2, %c0_3] : memref<1x32x96xf32, #tpu.memory_space<vmem>>, vector<1x32x96xf32>
    %4 = vector.shape_cast %3 : vector<1x32x96xf32> to vector<32x96xf32>
    %5 = arith.index_cast %arg1 : i32 to index
    %c0_4 = arith.constant 0 : index
    %c0_5 = arith.constant 0 : index
    %6 = vector.load %arg5[%5, %c0_4, %c0_5] : memref<1x1x96xf32, #tpu.memory_space<vmem>>, vector<1x1x96xf32>
    %7 = vector.shape_cast %6 : vector<1x1x96xf32> to vector<1x96xf32>
    %cst = arith.constant dense<0.000000e+00> : vector<8x96xf32>
    %8 = tpu.matmul %1, %4, %cst {dimension_numbers = #tpu.dot_dimension_numbers<[1], [0], [0], [1], [0, 0, 1, 1], [], []>} : vector<8x32xf32>, vector<32x96xf32>, vector<8x96xf32> -> vector<8x96xf32>
    %9 = vector.broadcast %7 : vector<1x96xf32> to vector<8x96xf32>
    %10 = arith.addf %8, %9 : vector<8x96xf32>
    %c0_6 = arith.constant 0 : index
    %c0_7 = arith.constant 0 : index
    %c0_8 = arith.constant 0 : index
    %11 = vector.load %arg3[%c0_6, %c0_7, %c0_8] : memref<1x1x8xf32, #tpu.memory_space<vmem>>, vector<1x1x8xf32>
    %12 = vector.shape_cast %11 : vector<1x1x8xf32> to vector<1x8xf32>
    %cst_9 = arith.constant -1.000000e+04 : f32
    %13 = vector.broadcast %cst_9 : f32 to vector<1x8xf32>
    %14 = arith.mulf %12, %13 : vector<1x8xf32>
    %15 = vector.extract_strided_slice %10 {offsets = [0, 0], sizes = [8, 8], strides = [1, 1]} : vector<8x96xf32> to vector<8x8xf32>
    %16 = vector.extract_strided_slice %10 {offsets = [0, 8], sizes = [8, 8], strides = [1, 1]} : vector<8x96xf32> to vector<8x8xf32>
    %17 = vector.extract_strided_slice %10 {offsets = [0, 16], sizes = [8, 8], strides = [1, 1]} : vector<8x96xf32> to vector<8x8xf32>
    %cst_10 = arith.constant dense<0.000000e+00> : vector<8x8xf32>
    %18 = tpu.matmul %15, %16, %cst_10 {dimension_numbers = #tpu.dot_dimension_numbers<[1], [1], [0], [0], [0, 0, 1, 0], [], []>} : vector<8x8xf32>, vector<8x8xf32>, vector<8x8xf32> -> vector<8x8xf32>
    %cst_11 = arith.constant 0.353553385 : f32
    %19 = vector.broadcast %cst_11 : f32 to vector<8x8xf32>
    %20 = arith.mulf %18, %19 : vector<8x8xf32>
    %21 = vector.broadcast %14 : vector<1x8xf32> to vector<8x8xf32>
    %22 = arith.addf %20, %21 : vector<8x8xf32>
    %c0_12 = arith.constant 0 : index
    %c0_13 = arith.constant 0 : index
    %c0_14 = arith.constant 0 : index
    %c0_15 = arith.constant 0 : index
    %23 = vector.load %arg6[%c0_12, %c0_13, %c0_14, %c0_15] : memref<1x4x8x8xf32, #tpu.memory_space<vmem>>, vector<1x1x8x8xf32>
    %24 = vector.shape_cast %23 : vector<1x1x8x8xf32> to vector<8x8xf32>
    %25 = vector.shape_cast %22 : vector<8x8xf32> to vector<1x1x8x8xf32>
    tpu.vector_store %arg6[%c0_12, %c0_13, %c0_14, %c0_15], %25 {strides = array<i32>} : memref<1x4x8x8xf32, #tpu.memory_space<vmem>>, vector<1x1x8x8xf32>,
    %cst_16 = arith.constant dense<0xFF800000> : vector<8xf32>
    %26 = vector.multi_reduction <maximumf>, %22, %cst_16 [1] : vector<8x8xf32> to vector<8xf32>
    %27 = vector.shape_cast %26 : vector<8xf32> to vector<8x1xf32>
    %28 = vector.broadcast %27 : vector<8x1xf32> to vector<8x8xf32>
    %29 = arith.subf %22, %28 : vector<8x8xf32>
    %30 = math.exp %29 : vector<8x8xf32>
    %cst_17 = arith.constant dense<0.000000e+00> : vector<8xf32>
    %31 = vector.multi_reduction <add>, %30, %cst_17 [1] : vector<8x8xf32> to vector<8xf32>
    %32 = vector.shape_cast %31 : vector<8xf32> to vector<8x1xf32>
    %cst_18 = arith.constant dense<0.000000e+00> : vector<8x8xf32>
    %33 = tpu.matmul %30, %17, %cst_18 {dimension_numbers = #tpu.dot_dimension_numbers<[1], [0], [0], [1], [0, 0, 1, 1], [], []>} : vector<8x8xf32>, vector<8x8xf32>, vector<8x8xf32> -> vector<8x8xf32>
    %34 = tpu.reciprocal %32 : vector<8x1xf32> -> vector<8x1xf32>
    %35 = vector.broadcast %34 : vector<8x1xf32> to vector<8x8xf32>
    %36 = arith.mulf %33, %35 : vector<8x8xf32>
    %37 = vector.extract_strided_slice %10 {offsets = [0, 24], sizes = [8, 8], strides = [1, 1]} : vector<8x96xf32> to vector<8x8xf32>
    %38 = vector.extract_strided_slice %10 {offsets = [0, 32], sizes = [8, 8], strides = [1, 1]} : vector<8x96xf32> to vector<8x8xf32>
    %39 = vector.extract_strided_slice %10 {offsets = [0, 40], sizes = [8, 8], strides = [1, 1]} : vector<8x96xf32> to vector<8x8xf32>
    %cst_19 = arith.constant dense<0.000000e+00> : vector<8x8xf32>
    %40 = tpu.matmul %37, %38, %cst_19 {dimension_numbers = #tpu.dot_dimension_numbers<[1], [1], [0], [0], [0, 0, 1, 0], [], []>} : vector<8x8xf32>, vector<8x8xf32>, vector<8x8xf32> -> vector<8x8xf32>
    %cst_20 = arith.constant 0.353553385 : f32
    %41 = vector.broadcast %cst_20 : f32 to vector<8x8xf32>
    %42 = arith.mulf %40, %41 : vector<8x8xf32>
    %43 = vector.broadcast %14 : vector<1x8xf32> to vector<8x8xf32>
    %44 = arith.addf %42, %43 : vector<8x8xf32>
    %c0_21 = arith.constant 0 : index
    %c1 = arith.constant 1 : index
    %c0_22 = arith.constant 0 : index
    %c0_23 = arith.constant 0 : index
    %45 = vector.load %arg6[%c0_21, %c1, %c0_22, %c0_23] : memref<1x4x8x8xf32, #tpu.memory_space<vmem>>, vector<1x1x8x8xf32>
    %46 = vector.shape_cast %45 : vector<1x1x8x8xf32> to vector<8x8xf32>
    %47 = vector.shape_cast %44 : vector<8x8xf32> to vector<1x1x8x8xf32>
    tpu.vector_store %arg6[%c0_21, %c1, %c0_22, %c0_23], %47 {strides = array<i32>} : memref<1x4x8x8xf32, #tpu.memory_space<vmem>>, vector<1x1x8x8xf32>,
    %cst_24 = arith.constant dense<0xFF800000> : vector<8xf32>
    %48 = vector.multi_reduction <maximumf>, %44, %cst_24 [1] : vector<8x8xf32> to vector<8xf32>
    %49 = vector.shape_cast %48 : vector<8xf32> to vector<8x1xf32>
    %50 = vector.broadcast %49 : vector<8x1xf32> to vector<8x8xf32>
    %51 = arith.subf %44, %50 : vector<8x8xf32>
    %52 = math.exp %51 : vector<8x8xf32>
    %cst_25 = arith.constant dense<0.000000e+00> : vector<8xf32>
    %53 = vector.multi_reduction <add>, %52, %cst_25 [1] : vector<8x8xf32> to vector<8xf32>
    %54 = vector.shape_cast %53 : vector<8xf32> to vector<8x1xf32>
    %cst_26 = arith.constant dense<0.000000e+00> : vector<8x8xf32>
    %55 = tpu.matmul %52, %39, %cst_26 {dimension_numbers = #tpu.dot_dimension_numbers<[1], [0], [0], [1], [0, 0, 1, 1], [], []>} : vector<8x8xf32>, vector<8x8xf32>, vector<8x8xf32> -> vector<8x8xf32>
    %56 = tpu.reciprocal %54 : vector<8x1xf32> -> vector<8x1xf32>
    %57 = vector.broadcast %56 : vector<8x1xf32> to vector<8x8xf32>
    %58 = arith.mulf %55, %57 : vector<8x8xf32>
    %59 = vector.extract_strided_slice %10 {offsets = [0, 48], sizes = [8, 8], strides = [1, 1]} : vector<8x96xf32> to vector<8x8xf32>
    %60 = vector.extract_strided_slice %10 {offsets = [0, 56], sizes = [8, 8], strides = [1, 1]} : vector<8x96xf32> to vector<8x8xf32>
    %61 = vector.extract_strided_slice %10 {offsets = [0, 64], sizes = [8, 8], strides = [1, 1]} : vector<8x96xf32> to vector<8x8xf32>
    %cst_27 = arith.constant dense<0.000000e+00> : vector<8x8xf32>
    %62 = tpu.matmul %59, %60, %cst_27 {dimension_numbers = #tpu.dot_dimension_numbers<[1], [1], [0], [0], [0, 0, 1, 0], [], []>} : vector<8x8xf32>, vector<8x8xf32>, vector<8x8xf32> -> vector<8x8xf32>
    %cst_28 = arith.constant 0.353553385 : f32
    %63 = vector.broadcast %cst_28 : f32 to vector<8x8xf32>
    %64 = arith.mulf %62, %63 : vector<8x8xf32>
    %65 = vector.broadcast %14 : vector<1x8xf32> to vector<8x8xf32>
    %66 = arith.addf %64, %65 : vector<8x8xf32>
    %c0_29 = arith.constant 0 : index
    %c2 = arith.constant 2 : index
    %c0_30 = arith.constant 0 : index
    %c0_31 = arith.constant 0 : index
    %67 = vector.load %arg6[%c0_29, %c2, %c0_30, %c0_31] : memref<1x4x8x8xf32, #tpu.memory_space<vmem>>, vector<1x1x8x8xf32>
    %68 = vector.shape_cast %67 : vector<1x1x8x8xf32> to vector<8x8xf32>
    %69 = vector.shape_cast %66 : vector<8x8xf32> to vector<1x1x8x8xf32>
    tpu.vector_store %arg6[%c0_29, %c2, %c0_30, %c0_31], %69 {strides = array<i32>} : memref<1x4x8x8xf32, #tpu.memory_space<vmem>>, vector<1x1x8x8xf32>,
    %cst_32 = arith.constant dense<0xFF800000> : vector<8xf32>
    %70 = vector.multi_reduction <maximumf>, %66, %cst_32 [1] : vector<8x8xf32> to vector<8xf32>
    %71 = vector.shape_cast %70 : vector<8xf32> to vector<8x1xf32>
    %72 = vector.broadcast %71 : vector<8x1xf32> to vector<8x8xf32>
    %73 = arith.subf %66, %72 : vector<8x8xf32>
    %74 = math.exp %73 : vector<8x8xf32>
    %cst_33 = arith.constant dense<0.000000e+00> : vector<8xf32>
    %75 = vector.multi_reduction <add>, %74, %cst_33 [1] : vector<8x8xf32> to vector<8xf32>
    %76 = vector.shape_cast %75 : vector<8xf32> to vector<8x1xf32>
    %cst_34 = arith.constant dense<0.000000e+00> : vector<8x8xf32>
    %77 = tpu.matmul %74, %61, %cst_34 {dimension_numbers = #tpu.dot_dimension_numbers<[1], [0], [0], [1], [0, 0, 1, 1], [], []>} : vector<8x8xf32>, vector<8x8xf32>, vector<8x8xf32> -> vector<8x8xf32>
    %78 = tpu.reciprocal %76 : vector<8x1xf32> -> vector<8x1xf32>
    %79 = vector.broadcast %78 : vector<8x1xf32> to vector<8x8xf32>
    %80 = arith.mulf %77, %79 : vector<8x8xf32>
    %81 = vector.extract_strided_slice %10 {offsets = [0, 72], sizes = [8, 8], strides = [1, 1]} : vector<8x96xf32> to vector<8x8xf32>
    %82 = vector.extract_strided_slice %10 {offsets = [0, 80], sizes = [8, 8], strides = [1, 1]} : vector<8x96xf32> to vector<8x8xf32>
    %83 = vector.extract_strided_slice %10 {offsets = [0, 88], sizes = [8, 8], strides = [1, 1]} : vector<8x96xf32> to vector<8x8xf32>
    %cst_35 = arith.constant dense<0.000000e+00> : vector<8x8xf32>
    %84 = tpu.matmul %81, %82, %cst_35 {dimension_numbers = #tpu.dot_dimension_numbers<[1], [1], [0], [0], [0, 0, 1, 0], [], []>} : vector<8x8xf32>, vector<8x8xf32>, vector<8x8xf32> -> vector<8x8xf32>
    %cst_36 = arith.constant 0.353553385 : f32
    %85 = vector.broadcast %cst_36 : f32 to vector<8x8xf32>
    %86 = arith.mulf %84, %85 : vector<8x8xf32>
    %87 = vector.broadcast %14 : vector<1x8xf32> to vector<8x8xf32>
    %88 = arith.addf %86, %87 : vector<8x8xf32>
    %c0_37 = arith.constant 0 : index
    %c3 = arith.constant 3 : index
    %c0_38 = arith.constant 0 : index
    %c0_39 = arith.constant 0 : index
    %89 = vector.load %arg6[%c0_37, %c3, %c0_38, %c0_39] : memref<1x4x8x8xf32, #tpu.memory_space<vmem>>, vector<1x1x8x8xf32>
    %90 = vector.shape_cast %89 : vector<1x1x8x8xf32> to vector<8x8xf32>
    %91 = vector.shape_cast %88 : vector<8x8xf32> to vector<1x1x8x8xf32>
    tpu.vector_store %arg6[%c0_37, %c3, %c0_38, %c0_39], %91 {strides = array<i32>} : memref<1x4x8x8xf32, #tpu.memory_space<vmem>>, vector<1x1x8x8xf32>,
    %cst_40 = arith.constant dense<0xFF800000> : vector<8xf32>
    %92 = vector.multi_reduction <maximumf>, %88, %cst_40 [1] : vector<8x8xf32> to vector<8xf32>
    %93 = vector.shape_cast %92 : vector<8xf32> to vector<8x1xf32>
    %94 = vector.broadcast %93 : vector<8x1xf32> to vector<8x8xf32>
    %95 = arith.subf %88, %94 : vector<8x8xf32>
    %96 = math.exp %95 : vector<8x8xf32>
    %cst_41 = arith.constant dense<0.000000e+00> : vector<8xf32>
    %97 = vector.multi_reduction <add>, %96, %cst_41 [1] : vector<8x8xf32> to vector<8xf32>
    %98 = vector.shape_cast %97 : vector<8xf32> to vector<8x1xf32>
    %cst_42 = arith.constant dense<0.000000e+00> : vector<8x8xf32>
    %99 = tpu.matmul %96, %83, %cst_42 {dimension_numbers = #tpu.dot_dimension_numbers<[1], [0], [0], [1], [0, 0, 1, 1], [], []>} : vector<8x8xf32>, vector<8x8xf32>, vector<8x8xf32> -> vector<8x8xf32>
    %100 = tpu.reciprocal %98 : vector<8x1xf32> -> vector<8x1xf32>
    %101 = vector.broadcast %100 : vector<8x1xf32> to vector<8x8xf32>
    %102 = arith.mulf %99, %101 : vector<8x8xf32>
    %103 = tpu.concatenate %36, %58, %80, %102 in 1 : vector<8x8xf32>, vector<8x8xf32>, vector<8x8xf32>, vector<8x8xf32> -> vector<8x32xf32>
    %c0_43 = arith.constant 0 : index
    %c0_44 = arith.constant 0 : index
    %c0_45 = arith.constant 0 : index
    %104 = vector.load %arg7[%c0_43, %c0_44, %c0_45] : memref<1x8x32xf32, #tpu.memory_space<vmem>>, vector<1x8x32xf32>
    %105 = vector.shape_cast %104 : vector<1x8x32xf32> to vector<8x32xf32>
    %106 = vector.shape_cast %103 : vector<8x32xf32> to vector<1x8x32xf32>
    tpu.vector_store %arg7[%c0_43, %c0_44, %c0_45], %106 {strides = array<i32>} : memref<1x8x32xf32, #tpu.memory_space<vmem>>, vector<1x8x32xf32>,
    return
  }
  func.func @transform_0(%arg0: i32, %arg1: i32) -> (i32, i32, i32) {
    %c0_i32 = arith.constant 0 : i32
    %c0_i32_0 = arith.constant 0 : i32
    %c0_i32_1 = arith.constant 0 : i32
    return %arg0, %c0_i32, %c0_i32_0 : i32, i32, i32
  }
  func.func @transform_1(%arg0: i32, %arg1: i32) -> (i32, i32, i32) {
    %c0_i32 = arith.constant 0 : i32
    %c0_i32_0 = arith.constant 0 : i32
    %c0_i32_1 = arith.constant 0 : i32
    return %arg0, %c0_i32, %c0_i32_0 : i32, i32, i32
  }
  func.func @transform_2(%arg0: i32, %arg1: i32) -> (i32, i32, i32) {
    %c0_i32 = arith.constant 0 : i32
    %c0_i32_0 = arith.constant 0 : i32
    %c0_i32_1 = arith.constant 0 : i32
    %c0_i32_2 = arith.constant 0 : i32
    return %c0_i32, %c0_i32_0, %c0_i32_1 : i32, i32, i32
  }
  func.func @transform_3(%arg0: i32, %arg1: i32) -> (i32, i32, i32) {
    %c0_i32 = arith.constant 0 : i32
    %c0_i32_0 = arith.constant 0 : i32
    %c0_i32_1 = arith.constant 0 : i32
    %c0_i32_2 = arith.constant 0 : i32
    return %c0_i32, %c0_i32_0, %c0_i32_1 : i32, i32, i32
  }
  func.func @transform_4(%arg0: i32, %arg1: i32) -> (i32, i32, i32, i32) {
    %c0_i32 = arith.constant 0 : i32
    %c0_i32_0 = arith.constant 0 : i32
    %c0_i32_1 = arith.constant 0 : i32
    return %arg0, %arg1, %c0_i32, %c0_i32_0 : i32, i32, i32, i32
  }
  func.func @transform_5(%arg0: i32, %arg1: i32) -> (i32, i32, i32) {
    %c0_i32 = arith.constant 0 : i32
    %c0_i32_0 = arith.constant 0 : i32
    return %arg0, %c0_i32, %arg1 : i32, i32, i32
  }
}

module attributes {stable_mosaic.version = 11 : i64} {
  func.func @_out_proj_ln_kernel(%arg0: i32, %arg1: memref<1x8x32xf32, #tpu.memory_space<vmem>>, %arg2: memref<32x32xf32, #tpu.memory_space<vmem>>, %arg3: memref<1x32xf32, #tpu.memory_space<vmem>>, %arg4: memref<1x8x32xf32, #tpu.memory_space<vmem>>, %arg5: memref<1x32xf32, #tpu.memory_space<vmem>>, %arg6: memref<1x32xf32, #tpu.memory_space<vmem>>, %arg7: memref<1x8x32xf32, #tpu.memory_space<vmem>>) attributes {dimension_semantics = [#tpu.dimension_semantics<parallel>], iteration_bounds = array<i64: 2>, scalar_prefetch = 0 : i64, scratch_operands = 0 : i64, tpu.core_type = #tpu.core_type<tc>, window_params = [{transform_indices = @transform_0, window_bounds = array<i64: 1, 8, 32>}, {pipeline_mode = #tpu.pipeline_mode<synchronous>, transform_indices = @transform_1, window_bounds = array<i64: 32, 32>}, {pipeline_mode = #tpu.pipeline_mode<synchronous>, transform_indices = @transform_2, window_bounds = array<i64: 1, 32>}, {transform_indices = @transform_3, window_bounds = array<i64: 1, 8, 32>}, {pipeline_mode = #tpu.pipeline_mode<synchronous>, transform_indices = @transform_4, window_bounds = array<i64: 1, 32>}, {pipeline_mode = #tpu.pipeline_mode<synchronous>, transform_indices = @transform_5, window_bounds = array<i64: 1, 32>}, {transform_indices = @transform_6, window_bounds = array<i64: 1, 8, 32>}]} {
    %c0 = arith.constant 0 : index
    %c0_0 = arith.constant 0 : index
    %c0_1 = arith.constant 0 : index
    %0 = vector.load %arg1[%c0, %c0_0, %c0_1] : memref<1x8x32xf32, #tpu.memory_space<vmem>>, vector<1x8x32xf32>
    %1 = vector.shape_cast %0 : vector<1x8x32xf32> to vector<8x32xf32>
    %c0_2 = arith.constant 0 : index
    %c0_3 = arith.constant 0 : index
    %2 = vector.load %arg2[%c0_2, %c0_3] : memref<32x32xf32, #tpu.memory_space<vmem>>, vector<32x32xf32>
    %cst = arith.constant dense<0.000000e+00> : vector<8x32xf32>
    %3 = tpu.matmul %1, %2, %cst {dimension_numbers = #tpu.dot_dimension_numbers<[1], [0], [0], [1], [0, 0, 1, 1], [], []>} : vector<8x32xf32>, vector<32x32xf32>, vector<8x32xf32> -> vector<8x32xf32>
    %c0_4 = arith.constant 0 : index
    %c0_5 = arith.constant 0 : index
    %4 = vector.load %arg3[%c0_4, %c0_5] : memref<1x32xf32, #tpu.memory_space<vmem>>, vector<1x32xf32>
    %5 = vector.broadcast %4 : vector<1x32xf32> to vector<8x32xf32>
    %6 = arith.addf %3, %5 : vector<8x32xf32>
    %c0_6 = arith.constant 0 : index
    %c0_7 = arith.constant 0 : index
    %c0_8 = arith.constant 0 : index
    %7 = vector.load %arg4[%c0_6, %c0_7, %c0_8] : memref<1x8x32xf32, #tpu.memory_space<vmem>>, vector<1x8x32xf32>
    %8 = vector.shape_cast %7 : vector<1x8x32xf32> to vector<8x32xf32>
    %9 = arith.addf %6, %8 : vector<8x32xf32>
    %cst_9 = arith.constant dense<0.000000e+00> : vector<8xf32>
    %10 = vector.multi_reduction <add>, %9, %cst_9 [1] : vector<8x32xf32> to vector<8xf32>
    %11 = vector.shape_cast %10 : vector<8xf32> to vector<8x1xf32>
    %cst_10 = arith.constant 3.200000e+01 : f32
    %12 = vector.broadcast %cst_10 : f32 to vector<8x1xf32>
    %13 = arith.divf %11, %12 : vector<8x1xf32>
    %14 = vector.broadcast %13 : vector<8x1xf32> to vector<8x32xf32>
    %15 = arith.subf %9, %14 : vector<8x32xf32>
    %16 = arith.mulf %15, %15 : vector<8x32xf32>
    %cst_11 = arith.constant dense<0.000000e+00> : vector<8xf32>
    %17 = vector.multi_reduction <add>, %16, %cst_11 [1] : vector<8x32xf32> to vector<8xf32>
    %18 = vector.shape_cast %17 : vector<8xf32> to vector<8x1xf32>
    %cst_12 = arith.constant 3.200000e+01 : f32
    %19 = vector.broadcast %cst_12 : f32 to vector<8x1xf32>
    %20 = arith.divf %18, %19 : vector<8x1xf32>
    %cst_13 = arith.constant 9.99999974E-6 : f32
    %21 = vector.broadcast %cst_13 : f32 to vector<8x1xf32>
    %22 = arith.addf %20, %21 : vector<8x1xf32>
    %23 = math.rsqrt %22 : vector<8x1xf32>
    %24 = vector.broadcast %23 : vector<8x1xf32> to vector<8x32xf32>
    %25 = arith.mulf %15, %24 : vector<8x32xf32>
    %c0_14 = arith.constant 0 : index
    %c0_15 = arith.constant 0 : index
    %26 = vector.load %arg5[%c0_14, %c0_15] : memref<1x32xf32, #tpu.memory_space<vmem>>, vector<1x32xf32>
    %27 = vector.broadcast %26 : vector<1x32xf32> to vector<8x32xf32>
    %28 = arith.mulf %25, %27 : vector<8x32xf32>
    %c0_16 = arith.constant 0 : index
    %c0_17 = arith.constant 0 : index
    %29 = vector.load %arg6[%c0_16, %c0_17] : memref<1x32xf32, #tpu.memory_space<vmem>>, vector<1x32xf32>
    %30 = vector.broadcast %29 : vector<1x32xf32> to vector<8x32xf32>
    %31 = arith.addf %28, %30 : vector<8x32xf32>
    %c0_18 = arith.constant 0 : index
    %c0_19 = arith.constant 0 : index
    %c0_20 = arith.constant 0 : index
    %32 = vector.load %arg7[%c0_18, %c0_19, %c0_20] : memref<1x8x32xf32, #tpu.memory_space<vmem>>, vector<1x8x32xf32>
    %33 = vector.shape_cast %32 : vector<1x8x32xf32> to vector<8x32xf32>
    %34 = vector.shape_cast %31 : vector<8x32xf32> to vector<1x8x32xf32>
    tpu.vector_store %arg7[%c0_18, %c0_19, %c0_20], %34 {strides = array<i32>} : memref<1x8x32xf32, #tpu.memory_space<vmem>>, vector<1x8x32xf32>,
    return
  }
  func.func @transform_0(%arg0: i32) -> (i32, i32, i32) {
    %c0_i32 = arith.constant 0 : i32
    %c0_i32_0 = arith.constant 0 : i32
    %c0_i32_1 = arith.constant 0 : i32
    return %arg0, %c0_i32, %c0_i32_0 : i32, i32, i32
  }
  func.func @transform_1(%arg0: i32) -> (i32, i32) {
    %c0_i32 = arith.constant 0 : i32
    %c0_i32_0 = arith.constant 0 : i32
    %c0_i32_1 = arith.constant 0 : i32
    return %c0_i32, %c0_i32_0 : i32, i32
  }
  func.func @transform_2(%arg0: i32) -> (i32, i32) {
    %c0_i32 = arith.constant 0 : i32
    %c0_i32_0 = arith.constant 0 : i32
    %c0_i32_1 = arith.constant 0 : i32
    return %c0_i32, %c0_i32_0 : i32, i32
  }
  func.func @transform_3(%arg0: i32) -> (i32, i32, i32) {
    %c0_i32 = arith.constant 0 : i32
    %c0_i32_0 = arith.constant 0 : i32
    %c0_i32_1 = arith.constant 0 : i32
    return %arg0, %c0_i32, %c0_i32_0 : i32, i32, i32
  }
  func.func @transform_4(%arg0: i32) -> (i32, i32) {
    %c0_i32 = arith.constant 0 : i32
    %c0_i32_0 = arith.constant 0 : i32
    %c0_i32_1 = arith.constant 0 : i32
    return %c0_i32, %c0_i32_0 : i32, i32
  }
  func.func @transform_5(%arg0: i32) -> (i32, i32) {
    %c0_i32 = arith.constant 0 : i32
    %c0_i32_0 = arith.constant 0 : i32
    %c0_i32_1 = arith.constant 0 : i32
    return %c0_i32, %c0_i32_0 : i32, i32
  }
  func.func @transform_6(%arg0: i32) -> (i32, i32, i32) {
    %c0_i32 = arith.constant 0 : i32
    %c0_i32_0 = arith.constant 0 : i32
    %c0_i32_1 = arith.constant 0 : i32
    return %arg0, %c0_i32, %c0_i32_0 : i32, i32, i32
  }
}

</mosaic_0001>

<llo_original>
// kernel: bert_attention.2
$region0: #{bert_attention.2}
  #allocation0 [shape = 'u32[]', space=smem, size = 0x4, offset = 0x4, fixed_abs, tag = 'smem constant byte address 0x4 - core index']
  #allocation1 [shape = 'u32[72,128]{1,0:T(1,128)}', space=vmem, size = 0x9000, scoped, tag = 'internal scratch']
  %s0 = inlined_call_operand.hbm [shape: f32[2,8,32], index: 0, kind: input, shape index: {}]
  %s1 = inlined_call_operand.hbm [shape: f32[2,1,8], index: 1, kind: input, shape index: {}]
  %s2 = inlined_call_operand.hbm [shape: f32[1,32,96], index: 2, kind: input, shape index: {}]
  %s3 = inlined_call_operand.vmem [shape: f32[1,1,96], index: 3, kind: input, shape index: {}]
  %s4 = inlined_call_operand.hbm [shape: f32[2,4,8,8], index: 4, kind: output, shape index: {0}]
  %s5 = inlined_call_operand.vmem [shape: f32[2,8,32], index: 5, kind: output, shape index: {1}]
  %6 = xla_tuple %s4, %s5
  %s7 = sld [smem:[#allocation0]]
  $region69: #{bert_attention.2} parent=0
    _
  %s9 = ssub.s32 1, %s7
  %s10 = scalar_select 0, %s9, %s7
  $region1: #{bert_attention.2} parent=0
    #allocation2 [shape = 'u8[8192]{0}', space=vmem, size = 0x2000, scoped, tag = 'input window, operand 0']
    #allocation3 [shape = 's32[2]{0}', space=sflag, size = 0x8, scoped, tag = 'scoped memory for bert_attention.2']
    #allocation4 [shape = 's32[2]{0}', space=sflag, size = 0x8, scoped, tag = 'scoped memory for bert_attention.2']
    #allocation5 [shape = 'u8[1024]{0}', space=vmem, size = 0x400, scoped, tag = 'input window, operand 1']
    #allocation6 [shape = 's32[2]{0}', space=sflag, size = 0x8, scoped, tag = 'scoped memory for bert_attention.2']
    #allocation7 [shape = 'u8[16384]{0}', space=vmem, size = 0x4000, scoped, tag = 'input window, operand 2, single buffered']
    #allocation8 [shape = 'u8[32768]{0}', space=vmem, size = 0x8000, scoped, tag = 'output window, operand 0']
    %11 = vsyncpa [#allocation3], 0
    %s12 = scalar_lea.sflag [#allocation3], 1
    %13 = vsyncpa %s12, 0
    %14 = vsyncpa [#allocation6], 0
    %s15 = scalar_lea.sflag [#allocation6], 1
    %16 = vsyncpa %s15, 0
    %17 = vsyncpa [#allocation4], 0
    %s18 = scalar_lea.sflag [#allocation4], 1
    %19 = vsyncpa %s18, 0
    loop: start=0, step=1, limit=4
    $region2: #{bert_attention.2} parent=1 // loop_pre_header
      _
    $region3: #{bert_attention.2} parent=1 // loop_header
      %s21 = sphi 0, %s25
      %p22 = scmp.ge.s32.totalorder %s21, 4
      %s28 = sphi 0, %s40
      %s29 = sphi 0, %s36
      %s30 = sphi 0, %s28
      %s31 = sphi 0, %s29
      %s32 = sphi 0, %s30
      %s33 = sphi 0, %s31
      %s43 = sphi 0, %s45
      %s46 = sphi 0, %s43
      %s47 = sphi 0, %s46
      %s63 = sphi 0, %s47
      %s69 = sphi 0, %s71
      %s72 = sphi 0, %s69
      %s73 = sphi 0, %s72
      %s89 = sphi 0, %s73
      %s93 = sphi 0, %s93
      %s95 = sphi 0, %s93
      %s96 = sphi 0, %s95
      %s110 = sphi 0, %s96
      %s114 = sphi 0, %s114
      %s116 = sphi 0, %s114
      %s117 = sphi 0, %s116
      %s131 = sphi 0, %s117
      %s139 = sphi 0, %s141
      %s142 = sphi 0, %s139
      %s143 = sphi 0, %s142
      %s159 = sphi 0, %s143
      %s167 = sphi 0, %s169
      %s170 = sphi 0, %s167
      %s171 = sphi 0, %s170
      %s187 = sphi 0, %s171
    $region4: #{bert_attention.2} parent=1 // loop_header_branch
      %24 = sbr.rel (%p22) target = $region8
    $region5: #{bert_attention.2} parent=1 // loop_body
      %s26 = ssub.s32 %s21, 1
      %s27 = ssub.s32 %s21, 2
      %s34 = sadd.s32 1, %s29
      %p35 = scmp.ge.s32.totalorder %s34, 1
      %s36 = scalar_select %p35, 0, %s34
      %s37 = sadd.s32 1, %s28
      %s38 = scalar_select %p35, %s37, %s28
      %p39 = scmp.ge.s32.totalorder %s38, 2
      %s40 = scalar_select %p39, 0, %s38
      %s41 = ssub.s32 %s28, %s40
      %p42 = scmp.eq.s32.totalorder %s41, 0
      %s44 = sadd.s32 %s43, 1
      %s45 = scalar_select %p42, %s43, %s44
      %p48 = pneg %p42
      %p49 = scmp.eq.s32.totalorder %s21, 1
      %p50 = por %p48, %p49
      %p51 = scmp.ne.s32.totalorder %s43, %s46
      %p52 = scmp.eq.s32.totalorder %s21, 0
      %p53 = por %p51, %p52
      %p54 = scmp.ne.s32.totalorder %s43, %s46
      %p55 = scmp.eq.s32.totalorder %s26, 1
      %p56 = por %p54, %p55
      %p57 = scmp.ne.s32.totalorder %s46, %s47
      %p58 = scmp.eq.s32.totalorder %s26, 0
      %p59 = por %p57, %p58
      %p60 = scmp.ne.s32.totalorder %s46, %s47
      %p61 = scmp.eq.s32.totalorder %s27, 1
      %p62 = por %p60, %p61
      %p64 = scmp.ne.s32.totalorder %s47, %s63
      %p65 = scmp.eq.s32.totalorder %s27, 0
      %p66 = por %p64, %p65
      %s67 = ssub.s32 %s28, %s40
      %p68 = scmp.eq.s32.totalorder %s67, 0
      %s70 = sadd.s32 %s69, 1
      %s71 = scalar_select %p68, %s69, %s70
      %p74 = pneg %p68
      %p75 = scmp.eq.s32.totalorder %s21, 1
      %p76 = por %p74, %p75
      %p77 = scmp.ne.s32.totalorder %s69, %s72
      %p78 = scmp.eq.s32.totalorder %s21, 0
      %p79 = por %p77, %p78
      %p80 = scmp.ne.s32.totalorder %s69, %s72
      %p81 = scmp.eq.s32.totalorder %s26, 1
      %p82 = por %p80, %p81
      %p83 = scmp.ne.s32.totalorder %s72, %s73
      %p84 = scmp.eq.s32.totalorder %s26, 0
      %p85 = por %p83, %p84
      %p86 = scmp.ne.s32.totalorder %s72, %s73
      %p87 = scmp.eq.s32.totalorder %s27, 1
      %p88 = por %p86, %p87
      %p90 = scmp.ne.s32.totalorder %s73, %s89
      %p91 = scmp.eq.s32.totalorder %s27, 0
      %p92 = por %p90, %p91
      %s94 = sadd.s32 %s93, 1
      %p97 = scmp.eq.s32.totalorder %s21, 1
      %p98 = scmp.ne.s32.totalorder %s93, %s95
      %p99 = scmp.eq.s32.totalorder %s21, 0
      %p100 = por %p98, %p99
      %p101 = scmp.ne.s32.totalorder %s93, %s95
      %p102 = scmp.eq.s32.totalorder %s26, 1
      %p103 = por %p101, %p102
      %p104 = scmp.ne.s32.totalorder %s95, %s96
      %p105 = scmp.eq.s32.totalorder %s26, 0
      %p106 = por %p104, %p105
      %p107 = scmp.ne.s32.totalorder %s95, %s96
      %p108 = scmp.eq.s32.totalorder %s27, 1
      %p109 = por %p107, %p108
      %p111 = scmp.ne.s32.totalorder %s96, %s110
      %p112 = scmp.eq.s32.totalorder %s27, 0
      %p113 = por %p111, %p112
      %s115 = sadd.s32 %s114, 1
      %p118 = scmp.eq.s32.totalorder %s21, 1
      %p119 = scmp.ne.s32.totalorder %s114, %s116
      %p120 = scmp.eq.s32.totalorder %s21, 0
      %p121 = por %p119, %p120
      %p122 = scmp.ne.s32.totalorder %s114, %s116
      %p123 = scmp.eq.s32.totalorder %s26, 1
      %p124 = por %p122, %p123
      %p125 = scmp.ne.s32.totalorder %s116, %s117
      %p126 = scmp.eq.s32.totalorder %s26, 0
      %p127 = por %p125, %p126
      %p128 = scmp.ne.s32.totalorder %s116, %s117
      %p129 = scmp.eq.s32.totalorder %s27, 1
      %p130 = por %p128, %p129
      %p132 = scmp.ne.s32.totalorder %s117, %s131
      %p133 = scmp.eq.s32.totalorder %s27, 0
      %p134 = por %p132, %p133
      %s135 = ssub.s32 %s28, %s40
      %s136 = ssub.s32 %s29, %s36
      %s137 = sor.u32 %s135, %s136
      %p138 = scmp.eq.s32.totalorder %s137, 0
      %s140 = sadd.s32 %s139, 1
      %s141 = scalar_select %p138, %s139, %s140
      %p144 = pneg %p138
      %p145 = scmp.eq.s32.totalorder %s21, 1
      %p146 = por %p144, %p145
      %p147 = scmp.ne.s32.totalorder %s139, %s142
      %p148 = scmp.eq.s32.totalorder %s21, 0
      %p149 = por %p147, %p148
      %p150 = scmp.ne.s32.totalorder %s139, %s142
      %p151 = scmp.eq.s32.totalorder %s26, 1
      %p152 = por %p150, %p151
      %p153 = scmp.ne.s32.totalorder %s142, %s143
      %p154 = scmp.eq.s32.totalorder %s26, 0
      %p155 = por %p153, %p154
      %p156 = scmp.ne.s32.totalorder %s142, %s143
      %p157 = scmp.eq.s32.totalorder %s27, 1
      %p158 = por %p156, %p157
      %p160 = scmp.ne.s32.totalorder %s143, %s159
      %p161 = scmp.eq.s32.totalorder %s27, 0
      %p162 = por %p160, %p161
      %s163 = ssub.s32 %s28, %s40
      %s164 = ssub.s32 %s29, %s36
      %s165 = sor.u32 %s163, %s164
      %p166 = scmp.eq.s32.totalorder %s165, 0
      %s168 = sadd.s32 %s167, 1
      %s169 = scalar_select %p166, %s167, %s168
      %p172 = pneg %p166
      %p173 = scmp.eq.s32.totalorder %s21, 1
      %p174 = por %p172, %p173
      %p175 = scmp.ne.s32.totalorder %s167, %s170
      %p176 = scmp.eq.s32.totalorder %s21, 0
      %p177 = por %p175, %p176
      %p178 = scmp.ne.s32.totalorder %s167, %s170
      %p179 = scmp.eq.s32.totalorder %s26, 1
      %p180 = por %p178, %p179
      %p181 = scmp.ne.s32.totalorder %s170, %s171
      %p182 = scmp.eq.s32.totalorder %s26, 0
      %p183 = por %p181, %p182
      %p184 = scmp.ne.s32.totalorder %s170, %s171
      %p185 = scmp.eq.s32.totalorder %s27, 1
      %p186 = por %p184, %p185
      %p188 = scmp.ne.s32.totalorder %s171, %s187
      %p189 = scmp.eq.s32.totalorder %s27, 0
      %p190 = por %p188, %p189
      %p191 = scmp.le.s32.totalorder 1, %s21
      %p192 = scmp.lt.s32.totalorder %s21, 3
      %p193 = pnand %p191, %p192
      %p194 = pneg %p193
      // Predicated region
      $region9: #{bert_attention.2} parent=5 // pred_check
        _
      $region10: #{bert_attention.2} parent=5 // pred_check_branch
        %196 = sbr.rel (%p193) target = $region12
      $region11: #{bert_attention.2} parent=5 // pred_region
        %s197 = ssub.s32 %s21, 1
        // Predicated region
        $region13: #{bert_attention.2} parent=11 // pred_check
          %p198 = pneg %p106
        $region14: #{bert_attention.2} parent=11 // pred_check_branch
          %200 = sbr.rel (%p198) target = $region16
        $region15: #{bert_attention.2} parent=11 // pred_region
          %202 = vsyncadd [#allocation6], 0
          %s203 = sshll.u32 %s2, 4
          %s204 = int_to_ptr.hbm [resolvable:$true] %s203
          %s205 = sshll.u32 [#allocation7], 4
          %s206 = int_to_ptr.vmem [resolvable:$true] %s205
          %211 = dma.hbm_to_vmem [thread:$0]  %s204, 512, %s206, [#allocation6], 128, 128, 8
        $region16: #{bert_attention.2} parent=11 // pred_fallthru
          _
        // Predicated region
        $region17: #{bert_attention.2} parent=11 // pred_check
          %p212 = pneg %p127
        $region18: #{bert_attention.2} parent=11 // pred_check_branch
          %214 = sbr.rel (%p212) target = $region20
        $region19: #{bert_attention.2} parent=11 // pred_region
          _
        $region20: #{bert_attention.2} parent=11 // pred_fallthru
          _
      $region12: #{bert_attention.2} parent=5 // pred_fallthru
        _
      %p215 = scmp.lt.s32.totalorder %s21, 2
      // Predicated region
      $region21: #{bert_attention.2} parent=5 // pred_check
        %p216 = pneg %p215
      $region22: #{bert_attention.2} parent=5 // pred_check_branch
        %218 = sbr.rel (%p216) target = $region24
      $region23: #{bert_attention.2} parent=5 // pred_region
        // Predicated region
        $region25: #{bert_attention.2} parent=23 // pred_check
          %p219 = pneg %p53
        $region26: #{bert_attention.2} parent=23 // pred_check_branch
          %221 = sbr.rel (%p219) target = $region28
        $region27: #{bert_attention.2} parent=23 // pred_region
          %s222 = sand.u32 %s43, 1
          %s223 = scalar_lea.sflag [#allocation3], %s222
          %s224 = sand.u32 %s43, 1
          %s225 = smul.addr %s224, 8
          %s226 = scalar_lea.vmem [#allocation2], %s225
          %228 = vsyncadd %s223, 0
          %s229 = smul.addr %s28, 8
          %s230 = scalar_lea.hbm %s0, %s229
          %s232 = sshll.u32 %s230, 4
          %s233 = int_to_ptr.hbm [resolvable:$true] %s232
          %s234 = sshll.u32 %s226, 4
          %s235 = int_to_ptr.vmem [resolvable:$true] %s234
          %237 = dma.hbm_to_vmem [thread:$0]  %s233, 128, %s235, %s223
        $region28: #{bert_attention.2} parent=23 // pred_fallthru
          _
        // Predicated region
        $region29: #{bert_attention.2} parent=23 // pred_check
          %p238 = pneg %p79
        $region30: #{bert_attention.2} parent=23 // pred_check_branch
          %240 = sbr.rel (%p238) target = $region32
        $region31: #{bert_attention.2} parent=23 // pred_region
          %s241 = sand.u32 %s21, 1
          %s242 = scalar_lea.sflag [#allocation6], %s241
          %s243 = sand.u32 %s69, 1
          %s244 = scalar_lea.vmem [#allocation5], %s243
          %246 = vsyncadd %s242, 0
          %s247 = scalar_lea.hbm %s1, %s28
          %s249 = sshll.u32 %s247, 4
          %s250 = int_to_ptr.hbm [resolvable:$true] %s249
          %s251 = sshll.u32 %s244, 4
          %s252 = int_to_ptr.vmem [resolvable:$true] %s251
          %254 = dma.hbm_to_vmem [thread:$0]  %s250, 16, %s252, %s242
        $region32: #{bert_attention.2} parent=23 // pred_fallthru
          _
      $region24: #{bert_attention.2} parent=5 // pred_fallthru
        _
      %p255 = scmp.le.s32.totalorder 1, %s21
      %p256 = scmp.lt.s32.totalorder %s21, 3
      %p257 = pnand %p255, %p256
      %p258 = pneg %p257
      // Predicated region
      $region33: #{bert_attention.2} parent=5 // pred_check
        _
      $region34: #{bert_attention.2} parent=5 // pred_check_branch
        %260 = sbr.rel (%p257) target = $region36
      $region35: #{bert_attention.2} parent=5 // pred_region
        %s261 = ssub.s32 %s21, 1
        %s262 = sand.u32 %s46, 1
        %s263 = scalar_lea.sflag [#allocation3], %s262
        %s264 = sand.u32 %s46, 1
        %s265 = smul.addr %s264, 8
        %s266 = scalar_lea.vmem [#allocation2], %s265
        // Predicated region
        $region37: #{bert_attention.2} parent=35 // pred_check
          %p267 = pneg %p59
        $region38: #{bert_attention.2} parent=35 // pred_check_branch
          %269 = sbr.rel (%p267) target = $region40
        $region39: #{bert_attention.2} parent=35 // pred_region
          %271 = dma.done %s263, 128
        $region40: #{bert_attention.2} parent=35 // pred_fallthru
          _
        %s272 = sand.u32 %s26, 1
        %s273 = scalar_lea.sflag [#allocation6], %s272
        %s274 = sand.u32 %s72, 1
        %s275 = scalar_lea.vmem [#allocation5], %s274
        // Predicated region
        $region41: #{bert_attention.2} parent=35 // pred_check
          %p276 = pneg %p85
        $region42: #{bert_attention.2} parent=35 // pred_check_branch
          %278 = sbr.rel (%p276) target = $region44
        $region43: #{bert_attention.2} parent=35 // pred_region
          %280 = dma.done %s273, 16
        $region44: #{bert_attention.2} parent=35 // pred_fallthru
          _
        // Predicated region
        $region45: #{bert_attention.2} parent=35 // pred_check
          %p281 = pneg %p106
        $region46: #{bert_attention.2} parent=35 // pred_check_branch
          %283 = sbr.rel (%p281) target = $region48
        $region47: #{bert_attention.2} parent=35 // pred_region
          %285 = dma.done [#allocation6], 512
        $region48: #{bert_attention.2} parent=35 // pred_fallthru
          _
        %s286 = sand.u32 %s46, 1
        %s287 = scalar_lea.sflag [#allocation3], %s286
        %s288 = sand.u32 %s46, 1
        %s289 = smul.addr %s288, 8
        %s290 = scalar_lea.vmem [#allocation2], %s289
        %p291 = pneg %p59
        %p292 = pneg %p56
        %s293 = sand.u32 %s26, 1
        %s294 = scalar_lea.sflag [#allocation6], %s293
        %s295 = sand.u32 %s72, 1
        %s296 = scalar_lea.vmem [#allocation5], %s295
        %p297 = pneg %p85
        %p298 = pneg %p82
        %p299 = pneg %p106
        %p300 = pneg %p103
        %p301 = pneg %p127
        %p302 = pneg %p124
        %p303 = pneg %p155
        %p304 = pneg %p152
        %s305 = sand.u32 %s142, 1
        %s306 = scalar_lea.sflag [#allocation4], %s305
        %s307 = sand.u32 %s142, 1
        %s308 = smul.addr %s307, 32
        %s309 = scalar_lea.vmem [#allocation8], %s308
        %p310 = pneg %p183
        %p311 = pneg %p180
        %p312 = scmp.lt.s32.totalorder %s30, 1
        %s313 = scalar_select %p312, %s30, 1
        %p314 = scmp.lt.s32.totalorder %s31, 0
        %s315 = scalar_select %p314, %s31, 0
        %s316 = sadd.s32 %s315, %s313
        %s317 = smul.addr %s316, 8
        %s318 = scalar_lea.vmem %s5, %s317
        %s319 = smul.u32 4, %s31
        %p320 = scmp.lt.s32.totalorder %s30, 1
        %s321 = scalar_select %p320, %s30, 1
        %p322 = scmp.lt.s32.totalorder %s31, 0
        %s323 = scalar_select %p322, %s31, 0
        %s324 = sadd.s32 %s323, %s321
        %s325 = smul.addr %s324, 8
        %s326 = scalar_lea.vmem %s5, %s325
        %v327 = vld [vmem:[%s266] sm:$0xff]
        %s328 = smul.u32 %s31, 32
        %s329 = scalar_lea.vmem [#allocation7], %s328
        %v330 = vld [vmem:[%s329] sm:$0xff]
        %v331 = vld [vmem:[%s329 + $0x8] sm:$0xff]
        %v332 = vld [vmem:[%s329 + $0x10] sm:$0xff]
        %v333 = vld [vmem:[%s329 + $0x18] sm:$0xff]
        %s334 = scalar_lea.vmem %s3, %s31
        %v335 = vld [vmem:[%s334] sm:$0x1]
        %v337 = vperm.slane %v335, 0
        %vm339 = vcmask 261120
        %v341 = vsel %vm339, %v327, 0
        %343 = vmatpush.msra.mxu0 0.0
        %344 = vmatpush.msra.mxu0 0.0
        %345 = vmatpush.msra.mxu0 0.0
        %346 = vmatpush.msra.mxu0 0.0
        %347 = vmatpush.msra.mxu0 0.0
        %348 = vmatpush.msra.mxu0 0.0
        %349 = vmatpush.msra.mxu0 0.0
        %350 = vmatpush.msra.mxu0 0.0
        %351 = vmatpush.msra.mxu0 0.0
        %352 = vmatpush.msra.mxu0 0.0
        %353 = vmatpush.msra.mxu0 0.0
        %354 = vmatpush.msra.mxu0 0.0
        %355 = vmatpush.msra.mxu0 %v333
        %356 = vmatpush.msra.mxu0 %v332
        %357 = vmatpush.msra.mxu0 %v331
        %358 = vmatpush.msra.mxu0 %v330
        %359 = vmatmul.f32.gmra.mxu0 %v341
        %v360 = vpop.f32.mrf.mxu0
        %v361 = vadd.f32 %v337, %v360
        %362 = vdwg.mxu0
        %v363 = vld [vmem:[%s275] sm:$0x1]
        %v364 = vmul.f32 %v363, -10000.0
        %366 = vrot.lane.b32.xlu0 %v361, 120
        %v367 = vpop.permute.xlu0 %366
        %vm368 = vcmask 64512
        %v369 = vsel %vm368, %v361, 0
        %v371 = vsel %vm368, %v367, 0
        %373 = vmatpush.xpose.msra.mxu0 0.0
        %374 = vmatpush.xpose.msra.mxu0 0.0
        %375 = vmatpush.xpose.msra.mxu0 0.0
        %376 = vmatpush.xpose.msra.mxu0 0.0
        %377 = vmatpush.xpose.msra.mxu0 0.0
        %378 = vmatpush.xpose.msra.mxu0 0.0
        %379 = vmatpush.xpose.msra.mxu0 0.0
        %380 = vmatpush.xpose.msra.mxu0 0.0
        %381 = vmatpush.xpose.msra.mxu0 0.0
        %382 = vmatpush.xpose.msra.mxu0 0.0
        %383 = vmatpush.xpose.msra.mxu0 0.0
        %384 = vmatpush.xpose.msra.mxu0 0.0
        %385 = vmatpush.xpose.msra.mxu0 0.0
        %386 = vmatpush.xpose.msra.mxu0 0.0
        %387 = vmatpush.xpose.msra.mxu0 0.0
        %388 = vmatpush.xpose.msra.mxu0 %v371
        %389 = vmatmul.f32.gmra.mxu0 %v369
        %v390 = vpop.f32.mrf.mxu0
        %v391 = vadd.f32 0.0, %v390
        %392 = vdwg.mxu0
        %v393 = vmul.f32 %v391, 0.35355338
        %v395 = vperm.slane %v364, 0
        %v397 = vadd.f32 %v393, %v395
        %398 = vst.msk [vmem:[%s309] sm:$0xff] %vm368, %v397
        %v399 = vsel %vm368, %v397, -inf
        %400 = vmax.xlane.f32.xlu0 %v399
        %v401 = vpop.xlane.xlu0 %400
        %v402 = vsub.f32 %v397, %v401
        %v403 = vmul.f32 %v402, 1.442695
        %v404 = vpow.pop %v403
        %v405 = vsel %vm368, %v404, 0.0
        %406 = vadd.xlane.f32.xlu0 %v405
        %v407 = vpop.xlane.xlu0 %406
        %408 = vrot.lane.b32.xlu0 %v361, 112
        %v409 = vpop.permute.xlu0 %408
        %v412 = vsel %vm368, %v404, 0
        %414 = vmatpush.msra.mxu0 0.0
        %415 = vmatpush.msra.mxu0 0.0
        %416 = vmatpush.msra.mxu0 0.0
        %417 = vmatpush.msra.mxu0 0.0
        %418 = vmatpush.msra.mxu0 0.0
        %419 = vmatpush.msra.mxu0 0.0
        %420 = vmatpush.msra.mxu0 0.0
        %421 = vmatpush.msra.mxu0 0.0
        %422 = vmatpush.msra.mxu0 0.0
        %423 = vmatpush.msra.mxu0 0.0
        %424 = vmatpush.msra.mxu0 0.0
        %425 = vmatpush.msra.mxu0 0.0
        %426 = vmatpush.msra.mxu0 0.0
        %427 = vmatpush.msra.mxu0 0.0
        %428 = vmatpush.msra.mxu0 0.0
        %429 = vmatpush.msra.mxu0 %v409
        %430 = vmatmul.f32.gmra.mxu0 %v412
        %v431 = vpop.f32.mrf.mxu0
        %v432 = vadd.f32 0.0, %v431
        %433 = vdwg.mxu0
        %v434 = vrcp.pop %v407
        %v435 = vmul.f32 %v407, %v434
        %v436 = vsub.f32 1.0, %v435
        %v437 = vmul.f32 %v434, %v436
        %v438 = vadd.f32 %v434, %v437
        %vm439 = vweird.f32 %v407
        %vm440 = vweird.f32 %v434
        %vm441 = vmor %vm439, %vm440
        %v442 = vsel %vm441, %v434, %v438
        %v443 = vand.u32 2147483647, %v407
        %vm444 = vcmp.eq.f32.partialorder %v443, 8.507059e+37
        %v445 = vand.u32 %v407, 2147483648
        %v446 = vor.u32 1.1754944e-38, %v445
        %v447 = vsel %vm444, %v446, %v442
        %v448 = vmul.f32 %v432, %v447
        %449 = vrot.lane.b32.xlu0 %v361, 104
        %v450 = vpop.permute.xlu0 %449
        %451 = vrot.lane.b32.xlu0 %v361, 96
        %v452 = vpop.permute.xlu0 %451
        %v453 = vsel %vm368, %v450, 0
        %v455 = vsel %vm368, %v452, 0
        %457 = vmatpush.xpose.msra.mxu0 0.0
        %458 = vmatpush.xpose.msra.mxu0 0.0
        %459 = vmatpush.xpose.msra.mxu0 0.0
        %460 = vmatpush.xpose.msra.mxu0 0.0
        %461 = vmatpush.xpose.msra.mxu0 0.0
        %462 = vmatpush.xpose.msra.mxu0 0.0
        %463 = vmatpush.xpose.msra.mxu0 0.0
        %464 = vmatpush.xpose.msra.mxu0 0.0
        %465 = vmatpush.xpose.msra.mxu0 0.0
        %466 = vmatpush.xpose.msra.mxu0 0.0
        %467 = vmatpush.xpose.msra.mxu0 0.0
        %468 = vmatpush.xpose.msra.mxu0 0.0
        %469 = vmatpush.xpose.msra.mxu0 0.0
        %470 = vmatpush.xpose.msra.mxu0 0.0
        %471 = vmatpush.xpose.msra.mxu0 0.0
        %472 = vmatpush.xpose.msra.mxu0 %v455
        %473 = vmatmul.f32.gmra.mxu0 %v453
        %v474 = vpop.f32.mrf.mxu0
        %v475 = vadd.f32 0.0, %v474
        %476 = vdwg.mxu0
        %v477 = vmul.f32 %v475, 0.35355338
        %v478 = vadd.f32 %v477, %v395
        %s479 = scalar_lea.vmem %s309, 8 [#allocation8]
        %480 = vst.msk [vmem:[%s479] sm:$0xff] %vm368, %v478
        %v481 = vsel %vm368, %v478, -inf
        %482 = vmax.xlane.f32.xlu0 %v481
        %v483 = vpop.xlane.xlu0 %482
        %v484 = vsub.f32 %v478, %v483
        %v485 = vmul.f32 %v484, 1.442695
        %v486 = vpow.pop %v485
        %v487 = vsel %vm368, %v486, 0.0
        %488 = vadd.xlane.f32.xlu0 %v487
        %v489 = vpop.xlane.xlu0 %488
        %490 = vrot.lane.b32.xlu0 %v361, 88
        %v491 = vpop.permute.xlu0 %490
        %v494 = vsel %vm368, %v486, 0
        %496 = vmatpush.msra.mxu0 0.0
        %497 = vmatpush.msra.mxu0 0.0
        %498 = vmatpush.msra.mxu0 0.0
        %499 = vmatpush.msra.mxu0 0.0
        %500 = vmatpush.msra.mxu0 0.0
        %501 = vmatpush.msra.mxu0 0.0
        %502 = vmatpush.msra.mxu0 0.0
        %503 = vmatpush.msra.mxu0 0.0
        %504 = vmatpush.msra.mxu0 0.0
        %505 = vmatpush.msra.mxu0 0.0
        %506 = vmatpush.msra.mxu0 0.0
        %507 = vmatpush.msra.mxu0 0.0
        %508 = vmatpush.msra.mxu0 0.0
        %509 = vmatpush.msra.mxu0 0.0
        %510 = vmatpush.msra.mxu0 0.0
        %511 = vmatpush.msra.mxu0 %v491
        %512 = vmatmul.f32.gmra.mxu0 %v494
        %v513 = vpop.f32.mrf.mxu0
        %v514 = vadd.f32 0.0, %v513
        %515 = vdwg.mxu0
        %v516 = vrcp.pop %v489
        %v517 = vmul.f32 %v489, %v516
        %v518 = vsub.f32 1.0, %v517
        %v519 = vmul.f32 %v516, %v518
        %v520 = vadd.f32 %v516, %v519
        %vm521 = vweird.f32 %v489
        %vm522 = vweird.f32 %v516
        %vm523 = vmor %vm521, %vm522
        %v524 = vsel %vm523, %v516, %v520
        %v525 = vand.u32 2147483647, %v489
        %vm526 = vcmp.eq.f32.partialorder %v525, 8.507059e+37
        %v527 = vand.u32 %v489, 2147483648
        %v528 = vor.u32 1.1754944e-38, %v527
        %v529 = vsel %vm526, %v528, %v524
        %v530 = vmul.f32 %v514, %v529
        %531 = vrot.lane.b32.xlu0 %v361, 80
        %v532 = vpop.permute.xlu0 %531
        %533 = vrot.lane.b32.xlu0 %v361, 72
        %v534 = vpop.permute.xlu0 %533
        %v535 = vsel %vm368, %v532, 0
        %v537 = vsel %vm368, %v534, 0
        %539 = vmatpush.xpose.msra.mxu0 0.0
        %540 = vmatpush.xpose.msra.mxu0 0.0
        %541 = vmatpush.xpose.msra.mxu0 0.0
        %542 = vmatpush.xpose.msra.mxu0 0.0
        %543 = vmatpush.xpose.msra.mxu0 0.0
        %544 = vmatpush.xpose.msra.mxu0 0.0
        %545 = vmatpush.xpose.msra.mxu0 0.0
        %546 = vmatpush.xpose.msra.mxu0 0.0
        %547 = vmatpush.xpose.msra.mxu0 0.0
        %548 = vmatpush.xpose.msra.mxu0 0.0
        %549 = vmatpush.xpose.msra.mxu0 0.0
        %550 = vmatpush.xpose.msra.mxu0 0.0
        %551 = vmatpush.xpose.msra.mxu0 0.0
        %552 = vmatpush.xpose.msra.mxu0 0.0
        %553 = vmatpush.xpose.msra.mxu0 0.0
        %554 = vmatpush.xpose.msra.mxu0 %v537
        %555 = vmatmul.f32.gmra.mxu0 %v535
        %v556 = vpop.f32.mrf.mxu0
        %v557 = vadd.f32 0.0, %v556
        %558 = vdwg.mxu0
        %v559 = vmul.f32 %v557, 0.35355338
        %v560 = vadd.f32 %v559, %v395
        %s561 = scalar_lea.vmem %s309, 16 [#allocation8]
        %562 = vst.msk [vmem:[%s561] sm:$0xff] %vm368, %v560
        %v563 = vsel %vm368, %v560, -inf
        %564 = vmax.xlane.f32.xlu0 %v563
        %v565 = vpop.xlane.xlu0 %564
        %v566 = vsub.f32 %v560, %v565
        %v567 = vmul.f32 %v566, 1.442695
        %v568 = vpow.pop %v567
        %v569 = vsel %vm368, %v568, 0.0
        %570 = vadd.xlane.f32.xlu0 %v569
        %v571 = vpop.xlane.xlu0 %570
        %572 = vrot.lane.b32.xlu0 %v361, 64
        %v573 = vpop.permute.xlu0 %572
        %v576 = vsel %vm368, %v568, 0
        %578 = vmatpush.msra.mxu0 0.0
        %579 = vmatpush.msra.mxu0 0.0
        %580 = vmatpush.msra.mxu0 0.0
        %581 = vmatpush.msra.mxu0 0.0
        %582 = vmatpush.msra.mxu0 0.0
        %583 = vmatpush.msra.mxu0 0.0
        %584 = vmatpush.msra.mxu0 0.0
        %585 = vmatpush.msra.mxu0 0.0
        %586 = vmatpush.msra.mxu0 0.0
        %587 = vmatpush.msra.mxu0 0.0
        %588 = vmatpush.msra.mxu0 0.0
        %589 = vmatpush.msra.mxu0 0.0
        %590 = vmatpush.msra.mxu0 0.0
        %591 = vmatpush.msra.mxu0 0.0
        %592 = vmatpush.msra.mxu0 0.0
        %593 = vmatpush.msra.mxu0 %v573
        %594 = vmatmul.f32.gmra.mxu0 %v576
        %v595 = vpop.f32.mrf.mxu0
        %v596 = vadd.f32 0.0, %v595
        %597 = vdwg.mxu0
        %v598 = vrcp.pop %v571
        %v599 = vmul.f32 %v571, %v598
        %v600 = vsub.f32 1.0, %v599
        %v601 = vmul.f32 %v598, %v600
        %v602 = vadd.f32 %v598, %v601
        %vm603 = vweird.f32 %v571
        %vm604 = vweird.f32 %v598
        %vm605 = vmor %vm603, %vm604
        %v606 = vsel %vm605, %v598, %v602
        %v607 = vand.u32 2147483647, %v571
        %vm608 = vcmp.eq.f32.partialorder %v607, 8.507059e+37
        %v609 = vand.u32 %v571, 2147483648
        %v610 = vor.u32 1.1754944e-38, %v609
        %v611 = vsel %vm608, %v610, %v606
        %v612 = vmul.f32 %v596, %v611
        %613 = vrot.lane.b32.xlu0 %v361, 56
        %v614 = vpop.permute.xlu0 %613
        %615 = vrot.lane.b32.xlu0 %v361, 48
        %v616 = vpop.permute.xlu0 %615
        %v617 = vsel %vm368, %v614, 0
        %v619 = vsel %vm368, %v616, 0
        %621 = vmatpush.xpose.msra.mxu0 0.0
        %622 = vmatpush.xpose.msra.mxu0 0.0
        %623 = vmatpush.xpose.msra.mxu0 0.0
        %624 = vmatpush.xpose.msra.mxu0 0.0
        %625 = vmatpush.xpose.msra.mxu0 0.0
        %626 = vmatpush.xpose.msra.mxu0 0.0
        %627 = vmatpush.xpose.msra.mxu0 0.0
        %628 = vmatpush.xpose.msra.mxu0 0.0
        %629 = vmatpush.xpose.msra.mxu0 0.0
        %630 = vmatpush.xpose.msra.mxu0 0.0
        %631 = vmatpush.xpose.msra.mxu0 0.0
        %632 = vmatpush.xpose.msra.mxu0 0.0
        %633 = vmatpush.xpose.msra.mxu0 0.0
        %634 = vmatpush.xpose.msra.mxu0 0.0
        %635 = vmatpush.xpose.msra.mxu0 0.0
        %636 = vmatpush.xpose.msra.mxu0 %v619
        %637 = vmatmul.f32.gmra.mxu0 %v617
        %v638 = vpop.f32.mrf.mxu0
        %v639 = vadd.f32 0.0, %v638
        %640 = vdwg.mxu0
        %v641 = vmul.f32 %v639, 0.35355338
        %v642 = vadd.f32 %v641, %v395
        %s643 = scalar_lea.vmem %s309, 24 [#allocation8]
        %644 = vst.msk [vmem:[%s643] sm:$0xff] %vm368, %v642
        %v645 = vsel %vm368, %v642, -inf
        %646 = vmax.xlane.f32.xlu0 %v645
        %v647 = vpop.xlane.xlu0 %646
        %v648 = vsub.f32 %v642, %v647
        %v649 = vmul.f32 %v648, 1.442695
        %v650 = vpow.pop %v649
        %v651 = vsel %vm368, %v650, 0.0
        %652 = vadd.xlane.f32.xlu0 %v651
        %v653 = vpop.xlane.xlu0 %652
        %654 = vrot.lane.b32.xlu0 %v361, 40
        %v655 = vpop.permute.xlu0 %654
        %v658 = vsel %vm368, %v650, 0
        %660 = vmatpush.msra.mxu0 0.0
        %661 = vmatpush.msra.mxu0 0.0
        %662 = vmatpush.msra.mxu0 0.0
        %663 = vmatpush.msra.mxu0 0.0
        %664 = vmatpush.msra.mxu0 0.0
        %665 = vmatpush.msra.mxu0 0.0
        %666 = vmatpush.msra.mxu0 0.0
        %667 = vmatpush.msra.mxu0 0.0
        %668 = vmatpush.msra.mxu0 0.0
        %669 = vmatpush.msra.mxu0 0.0
        %670 = vmatpush.msra.mxu0 0.0
        %671 = vmatpush.msra.mxu0 0.0
        %672 = vmatpush.msra.mxu0 0.0
        %673 = vmatpush.msra.mxu0 0.0
        %674 = vmatpush.msra.mxu0 0.0
        %675 = vmatpush.msra.mxu0 %v655
        %676 = vmatmul.f32.gmra.mxu0 %v658
        %v677 = vpop.f32.mrf.mxu0
        %v678 = vadd.f32 0.0, %v677
        %679 = vdwg.mxu0
        %v680 = vrcp.pop %v653
        %v681 = vmul.f32 %v653, %v680
        %v682 = vsub.f32 1.0, %v681
        %v683 = vmul.f32 %v680, %v682
        %v684 = vadd.f32 %v680, %v683
        %vm685 = vweird.f32 %v653
        %vm686 = vweird.f32 %v680
        %vm687 = vmor %vm685, %vm686
        %v688 = vsel %vm687, %v680, %v684
        %v689 = vand.u32 2147483647, %v653
        %vm690 = vcmp.eq.f32.partialorder %v689, 8.507059e+37
        %v691 = vand.u32 %v653, 2147483648
        %v692 = vor.u32 1.1754944e-38, %v691
        %v693 = vsel %vm690, %v692, %v688
        %v694 = vmul.f32 %v678, %v693
        %696 = vrot.lane.b32.xlu0 %v530, 8
        %v697 = vpop.permute.xlu0 %696
        %700 = vrot.lane.b32.xlu0 %v612, 16
        %v701 = vpop.permute.xlu0 %700
        %704 = vrot.lane.b32.xlu0 %v694, 24
        %v705 = vpop.permute.xlu0 %704
        %v707 = vsel %vm368, %v448, %v697
        %vm708 = vcmask 130048
        %v709 = vsel %vm708, %v707, %v701
        %vm710 = vcmask 195584
        %v711 = vsel %vm710, %v709, %v705
        %712 = vst.msk [vmem:[%s326] sm:$0xff] %vm339, %v711
        %s713 = sand.u32 %s142, 1
        %s714 = scalar_lea.sflag [#allocation4], %s713
        %s715 = sand.u32 %s142, 1
        %s716 = smul.addr %s715, 32
        %s717 = scalar_lea.vmem [#allocation8], %s716
        %p718 = scmp.lt.s32.totalorder %s30, 1
        %s719 = scalar_select %p718, %s30, 1
        %p720 = scmp.lt.s32.totalorder %s31, 0
        %s721 = scalar_select %p720, %s31, 0
        %s722 = sadd.s32 %s721, %s719
        %s723 = smul.addr %s722, 8
        %s724 = scalar_lea.vmem %s5, %s723
        // Predicated region
        $region49: #{bert_attention.2} parent=35 // pred_check
          %p725 = pneg %p152
        $region50: #{bert_attention.2} parent=35 // pred_check_branch
          %727 = sbr.rel (%p725) target = $region52
        $region51: #{bert_attention.2} parent=35 // pred_region
          %s728 = smul.u32 4, %s31
          %730 = vsyncadd %s714, 0
          %s731 = smul.addr %s30, 4
          %s732 = sadd.s32 %s728, %s731
          %s733 = smul.addr %s732, 8
          %s734 = scalar_lea.hbm %s4, %s733
          %s735 = sshll.u32 %s717, 4
          %s736 = int_to_ptr.vmem [resolvable:$true] %s735
          %s737 = sshll.u32 %s734, 4
          %s738 = int_to_ptr.hbm [resolvable:$true] %s737
          %743 = dma.vmem_to_hbm [thread:$0]  %s736, 512, %s738, %s714, 128, 128, 8
        $region52: #{bert_attention.2} parent=35 // pred_fallthru
          _
        // Predicated region
        $region53: #{bert_attention.2} parent=35 // pred_check
          %p744 = pneg %p180
        $region54: #{bert_attention.2} parent=35 // pred_check_branch
          %746 = sbr.rel (%p744) target = $region56
        $region55: #{bert_attention.2} parent=35 // pred_region
          _
        $region56: #{bert_attention.2} parent=35 // pred_fallthru
          _
      $region36: #{bert_attention.2} parent=5 // pred_fallthru
        _
      %p747 = scmp.le.s32.totalorder 2, %s21
      // Predicated region
      $region57: #{bert_attention.2} parent=5 // pred_check
        %p748 = pneg %p747
      $region58: #{bert_attention.2} parent=5 // pred_check_branch
        %750 = sbr.rel (%p748) target = $region60
      $region59: #{bert_attention.2} parent=5 // pred_region
        %s751 = ssub.s32 %s21, 2
        // Predicated region
        $region61: #{bert_attention.2} parent=59 // pred_check
          %p752 = pneg %p158
        $region62: #{bert_attention.2} parent=59 // pred_check_branch
          %754 = sbr.rel (%p752) target = $region64
        $region63: #{bert_attention.2} parent=59 // pred_region
          %s755 = sand.u32 %s143, 1
          %s756 = scalar_lea.sflag [#allocation4], %s755
          %s757 = sand.u32 %s143, 1
          %s758 = smul.addr %s757, 32
          %s759 = scalar_lea.vmem [#allocation8], %s758
          %761 = dma.done %s756, 512
        $region64: #{bert_attention.2} parent=59 // pred_fallthru
          _
        // Predicated region
        $region65: #{bert_attention.2} parent=59 // pred_check
          %p762 = pneg %p186
        $region66: #{bert_attention.2} parent=59 // pred_check_branch
          %764 = sbr.rel (%p762) target = $region68
        $region67: #{bert_attention.2} parent=59 // pred_region
          %p765 = scmp.lt.s32.totalorder %s32, 1
          %s766 = scalar_select %p765, %s32, 1
          %p767 = scmp.lt.s32.totalorder %s33, 0
          %s768 = scalar_select %p767, %s33, 0
          %s769 = sadd.s32 %s768, %s766
          %s770 = smul.addr %s769, 8
          %s771 = scalar_lea.vmem %s5, %s770
        $region68: #{bert_attention.2} parent=59 // pred_fallthru
          _
      $region60: #{bert_attention.2} parent=5 // pred_fallthru
        _
    $region6: #{bert_attention.2} parent=1 // loop_footer
      %s25 = sadd.s32 1, %s21
    $region7: #{bert_attention.2} parent=1 // loop_footer_branch
      %20 = sbr.rel target = $region3
    $region8: #{bert_attention.2} parent=1 // loop_exit
      _
    %772 = vsyncpa [#allocation3], 1
    %s773 = scalar_lea.sflag [#allocation3], 1
    %774 = vsyncpa %s773, 1
    %775 = vsyncpa [#allocation6], 1
    %s776 = scalar_lea.sflag [#allocation6], 1
    %777 = vsyncpa %s776, 1
    %778 = vsyncpa [#allocation4], 1
    %s779 = scalar_lea.sflag [#allocation4], 1
    %780 = vsyncpa %s779, 1

// kernel: bert_attention.3
$region0: #{bert_attention.3}
  #allocation0 [shape = 'u32[]', space=smem, size = 0x4, offset = 0x4, fixed_abs, tag = 'smem constant byte address 0x4 - core index']
  #allocation1 [shape = 'u32[72,128]{1,0:T(1,128)}', space=vmem, size = 0x9000, scoped, tag = 'internal scratch']
  %s0 = inlined_call_operand.vmem [shape: f32[2,8,32], index: 0, kind: input, shape index: {}]
  %s1 = inlined_call_operand.hbm [shape: f32[32,32], index: 1, kind: input, shape index: {}]
  %s2 = inlined_call_operand.vmem [shape: f32[1,32], index: 2, kind: input, shape index: {}]
  %s3 = inlined_call_operand.vmem [shape: f32[2,8,32], index: 3, kind: input, shape index: {}]
  %s4 = inlined_call_operand.vmem [shape: f32[1,32], index: 4, kind: input, shape index: {}]
  %s5 = inlined_call_operand.vmem [shape: f32[1,32], index: 5, kind: input, shape index: {}]
  %s6 = inlined_call_operand.hbm [shape: f32[2,8,32], index: 6, kind: output, shape index: {}]
  %s7 = sld [smem:[#allocation0]]
  $region61: #{bert_attention.3} parent=0
    _
  %s9 = ssub.s32 1, %s7
  %s10 = scalar_select 0, %s9, %s7
  $region1: #{bert_attention.3} parent=0
    #allocation2 [shape = 'u8[16384]{0}', space=vmem, size = 0x4000, scoped, tag = 'input window, operand 1, single buffered']
    #allocation3 [shape = 's32[2]{0}', space=sflag, size = 0x8, scoped, tag = 'scoped memory for bert_attention.3']
    #allocation4 [shape = 's32[2]{0}', space=sflag, size = 0x8, scoped, tag = 'scoped memory for bert_attention.3']
    #allocation5 [shape = 'u8[8192]{0}', space=vmem, size = 0x2000, scoped, tag = 'output window, operand 0']
    %11 = vsyncpa [#allocation3], 0
    %12 = vsyncpa [#allocation4], 0
    %s13 = scalar_lea.sflag [#allocation4], 1
    %14 = vsyncpa %s13, 0
    loop: start=0, step=1, limit=4
    $region2: #{bert_attention.3} parent=1 // loop_pre_header
      _
    $region3: #{bert_attention.3} parent=1 // loop_header
      %s16 = sphi 0, %s20
      %p17 = scmp.ge.s32.totalorder %s16, 4
      %s26 = sphi 0, %s28
      %s29 = sphi 0, %s26
      %s30 = sphi 0, %s29
      %s46 = sphi 0, %s30
      %s50 = sphi 0, %s50
      %s52 = sphi 0, %s50
      %s53 = sphi 0, %s52
      %s67 = sphi 0, %s53
      %s71 = sphi 0, %s71
      %s73 = sphi 0, %s71
      %s74 = sphi 0, %s73
      %s88 = sphi 0, %s74
      %s94 = sphi 0, %s96
      %s97 = sphi 0, %s94
      %s98 = sphi 0, %s97
      %s114 = sphi 0, %s98
      %s118 = sphi 0, %s118
      %s120 = sphi 0, %s118
      %s121 = sphi 0, %s120
      %s135 = sphi 0, %s121
      %s139 = sphi 0, %s139
      %s141 = sphi 0, %s139
      %s142 = sphi 0, %s141
      %s156 = sphi 0, %s142
      %s162 = sphi 0, %s164
      %s165 = sphi 0, %s162
      %s166 = sphi 0, %s165
      %s182 = sphi 0, %s166
    $region4: #{bert_attention.3} parent=1 // loop_header_branch
      %19 = sbr.rel (%p17) target = $region8
    $region5: #{bert_attention.3} parent=1 // loop_body
      %s21 = ssub.s32 %s16, 1
      %s22 = ssub.s32 %s16, 2
      %s23 = sadd.s32 %s16, 1
      %s24 = ssub.s32 %s16, %s23
      %p25 = scmp.eq.s32.totalorder %s24, 0
      %s27 = sadd.s32 %s26, 1
      %s28 = scalar_select %p25, %s26, %s27
      %p31 = pneg %p25
      %p32 = scmp.eq.s32.totalorder %s16, 1
      %p33 = por %p31, %p32
      %p34 = scmp.ne.s32.totalorder %s26, %s29
      %p35 = scmp.eq.s32.totalorder %s16, 0
      %p36 = por %p34, %p35
      %p37 = scmp.ne.s32.totalorder %s26, %s29
      %p38 = scmp.eq.s32.totalorder %s21, 1
      %p39 = por %p37, %p38
      %p40 = scmp.ne.s32.totalorder %s29, %s30
      %p41 = scmp.eq.s32.totalorder %s21, 0
      %p42 = por %p40, %p41
      %p43 = scmp.ne.s32.totalorder %s29, %s30
      %p44 = scmp.eq.s32.totalorder %s22, 1
      %p45 = por %p43, %p44
      %p47 = scmp.ne.s32.totalorder %s30, %s46
      %p48 = scmp.eq.s32.totalorder %s22, 0
      %p49 = por %p47, %p48
      %s51 = sadd.s32 %s50, 1
      %p54 = scmp.eq.s32.totalorder %s16, 1
      %p55 = scmp.ne.s32.totalorder %s50, %s52
      %p56 = scmp.eq.s32.totalorder %s16, 0
      %p57 = por %p55, %p56
      %p58 = scmp.ne.s32.totalorder %s50, %s52
      %p59 = scmp.eq.s32.totalorder %s21, 1
      %p60 = por %p58, %p59
      %p61 = scmp.ne.s32.totalorder %s52, %s53
      %p62 = scmp.eq.s32.totalorder %s21, 0
      %p63 = por %p61, %p62
      %p64 = scmp.ne.s32.totalorder %s52, %s53
      %p65 = scmp.eq.s32.totalorder %s22, 1
      %p66 = por %p64, %p65
      %p68 = scmp.ne.s32.totalorder %s53, %s67
      %p69 = scmp.eq.s32.totalorder %s22, 0
      %p70 = por %p68, %p69
      %s72 = sadd.s32 %s71, 1
      %p75 = scmp.eq.s32.totalorder %s16, 1
      %p76 = scmp.ne.s32.totalorder %s71, %s73
      %p77 = scmp.eq.s32.totalorder %s16, 0
      %p78 = por %p76, %p77
      %p79 = scmp.ne.s32.totalorder %s71, %s73
      %p80 = scmp.eq.s32.totalorder %s21, 1
      %p81 = por %p79, %p80
      %p82 = scmp.ne.s32.totalorder %s73, %s74
      %p83 = scmp.eq.s32.totalorder %s21, 0
      %p84 = por %p82, %p83
      %p85 = scmp.ne.s32.totalorder %s73, %s74
      %p86 = scmp.eq.s32.totalorder %s22, 1
      %p87 = por %p85, %p86
      %p89 = scmp.ne.s32.totalorder %s74, %s88
      %p90 = scmp.eq.s32.totalorder %s22, 0
      %p91 = por %p89, %p90
      %s92 = ssub.s32 %s16, %s23
      %p93 = scmp.eq.s32.totalorder %s92, 0
      %s95 = sadd.s32 %s94, 1
      %s96 = scalar_select %p93, %s94, %s95
      %p99 = pneg %p93
      %p100 = scmp.eq.s32.totalorder %s16, 1
      %p101 = por %p99, %p100
      %p102 = scmp.ne.s32.totalorder %s94, %s97
      %p103 = scmp.eq.s32.totalorder %s16, 0
      %p104 = por %p102, %p103
      %p105 = scmp.ne.s32.totalorder %s94, %s97
      %p106 = scmp.eq.s32.totalorder %s21, 1
      %p107 = por %p105, %p106
      %p108 = scmp.ne.s32.totalorder %s97, %s98
      %p109 = scmp.eq.s32.totalorder %s21, 0
      %p110 = por %p108, %p109
      %p111 = scmp.ne.s32.totalorder %s97, %s98
      %p112 = scmp.eq.s32.totalorder %s22, 1
      %p113 = por %p111, %p112
      %p115 = scmp.ne.s32.totalorder %s98, %s114
      %p116 = scmp.eq.s32.totalorder %s22, 0
      %p117 = por %p115, %p116
      %s119 = sadd.s32 %s118, 1
      %p122 = scmp.eq.s32.totalorder %s16, 1
      %p123 = scmp.ne.s32.totalorder %s118, %s120
      %p124 = scmp.eq.s32.totalorder %s16, 0
      %p125 = por %p123, %p124
      %p126 = scmp.ne.s32.totalorder %s118, %s120
      %p127 = scmp.eq.s32.totalorder %s21, 1
      %p128 = por %p126, %p127
      %p129 = scmp.ne.s32.totalorder %s120, %s121
      %p130 = scmp.eq.s32.totalorder %s21, 0
      %p131 = por %p129, %p130
      %p132 = scmp.ne.s32.totalorder %s120, %s121
      %p133 = scmp.eq.s32.totalorder %s22, 1
      %p134 = por %p132, %p133
      %p136 = scmp.ne.s32.totalorder %s121, %s135
      %p137 = scmp.eq.s32.totalorder %s22, 0
      %p138 = por %p136, %p137
      %s140 = sadd.s32 %s139, 1
      %p143 = scmp.eq.s32.totalorder %s16, 1
      %p144 = scmp.ne.s32.totalorder %s139, %s141
      %p145 = scmp.eq.s32.totalorder %s16, 0
      %p146 = por %p144, %p145
      %p147 = scmp.ne.s32.totalorder %s139, %s141
      %p148 = scmp.eq.s32.totalorder %s21, 1
      %p149 = por %p147, %p148
      %p150 = scmp.ne.s32.totalorder %s141, %s142
      %p151 = scmp.eq.s32.totalorder %s21, 0
      %p152 = por %p150, %p151
      %p153 = scmp.ne.s32.totalorder %s141, %s142
      %p154 = scmp.eq.s32.totalorder %s22, 1
      %p155 = por %p153, %p154
      %p157 = scmp.ne.s32.totalorder %s142, %s156
      %p158 = scmp.eq.s32.totalorder %s22, 0
      %p159 = por %p157, %p158
      %s160 = ssub.s32 %s16, %s23
      %p161 = scmp.eq.s32.totalorder %s160, 0
      %s163 = sadd.s32 %s162, 1
      %s164 = scalar_select %p161, %s162, %s163
      %p167 = pneg %p161
      %p168 = scmp.eq.s32.totalorder %s16, 1
      %p169 = por %p167, %p168
      %p170 = scmp.ne.s32.totalorder %s162, %s165
      %p171 = scmp.eq.s32.totalorder %s16, 0
      %p172 = por %p170, %p171
      %p173 = scmp.ne.s32.totalorder %s162, %s165
      %p174 = scmp.eq.s32.totalorder %s21, 1
      %p175 = por %p173, %p174
      %p176 = scmp.ne.s32.totalorder %s165, %s166
      %p177 = scmp.eq.s32.totalorder %s21, 0
      %p178 = por %p176, %p177
      %p179 = scmp.ne.s32.totalorder %s165, %s166
      %p180 = scmp.eq.s32.totalorder %s22, 1
      %p181 = por %p179, %p180
      %p183 = scmp.ne.s32.totalorder %s166, %s182
      %p184 = scmp.eq.s32.totalorder %s22, 0
      %p185 = por %p183, %p184
      %p186 = scmp.le.s32.totalorder 1, %s16
      %p187 = scmp.lt.s32.totalorder %s16, 3
      %p188 = pnand %p186, %p187
      %p189 = pneg %p188
      // Predicated region
      $region9: #{bert_attention.3} parent=5 // pred_check
        _
      $region10: #{bert_attention.3} parent=5 // pred_check_branch
        %191 = sbr.rel (%p188) target = $region12
      $region11: #{bert_attention.3} parent=5 // pred_region
        %s192 = ssub.s32 %s16, 1
        // Predicated region
        $region13: #{bert_attention.3} parent=11 // pred_check
          %p193 = pneg %p63
        $region14: #{bert_attention.3} parent=11 // pred_check_branch
          %195 = sbr.rel (%p193) target = $region16
        $region15: #{bert_attention.3} parent=11 // pred_region
          %197 = vsyncadd [#allocation3], 0
          %s198 = sshll.u32 %s1, 4
          %s199 = int_to_ptr.hbm [resolvable:$true] %s198
          %s200 = sshll.u32 [#allocation2], 4
          %s201 = int_to_ptr.vmem [resolvable:$true] %s200
          %206 = dma.hbm_to_vmem [thread:$0]  %s199, 512, %s201, [#allocation3], 128, 128, 8
        $region16: #{bert_attention.3} parent=11 // pred_fallthru
          _
        // Predicated region
        $region17: #{bert_attention.3} parent=11 // pred_check
          %p207 = pneg %p84
        $region18: #{bert_attention.3} parent=11 // pred_check_branch
          %209 = sbr.rel (%p207) target = $region20
        $region19: #{bert_attention.3} parent=11 // pred_region
          _
        $region20: #{bert_attention.3} parent=11 // pred_fallthru
          _
        // Predicated region
        $region21: #{bert_attention.3} parent=11 // pred_check
          %p210 = pneg %p131
        $region22: #{bert_attention.3} parent=11 // pred_check_branch
          %212 = sbr.rel (%p210) target = $region24
        $region23: #{bert_attention.3} parent=11 // pred_region
          _
        $region24: #{bert_attention.3} parent=11 // pred_fallthru
          _
        // Predicated region
        $region25: #{bert_attention.3} parent=11 // pred_check
          %p213 = pneg %p152
        $region26: #{bert_attention.3} parent=11 // pred_check_branch
          %215 = sbr.rel (%p213) target = $region28
        $region27: #{bert_attention.3} parent=11 // pred_region
          _
        $region28: #{bert_attention.3} parent=11 // pred_fallthru
          _
      $region12: #{bert_attention.3} parent=5 // pred_fallthru
        _
      %p216 = scmp.lt.s32.totalorder %s16, 2
      // Predicated region
      $region29: #{bert_attention.3} parent=5 // pred_check
        %p217 = pneg %p216
      $region30: #{bert_attention.3} parent=5 // pred_check_branch
        %219 = sbr.rel (%p217) target = $region32
      $region31: #{bert_attention.3} parent=5 // pred_region
        // Predicated region
        $region33: #{bert_attention.3} parent=31 // pred_check
          %p220 = pneg %p36
        $region34: #{bert_attention.3} parent=31 // pred_check_branch
          %222 = sbr.rel (%p220) target = $region36
        $region35: #{bert_attention.3} parent=31 // pred_region
          %p223 = scmp.lt.s32.totalorder %s16, 1
          %s224 = scalar_select %p223, %s16, 1
          %s225 = smul.addr %s224, 8
          %s226 = scalar_lea.vmem %s0, %s225
        $region36: #{bert_attention.3} parent=31 // pred_fallthru
          _
        // Predicated region
        $region37: #{bert_attention.3} parent=31 // pred_check
          %p227 = pneg %p104
        $region38: #{bert_attention.3} parent=31 // pred_check_branch
          %229 = sbr.rel (%p227) target = $region40
        $region39: #{bert_attention.3} parent=31 // pred_region
          %p230 = scmp.lt.s32.totalorder %s16, 1
          %s231 = scalar_select %p230, %s16, 1
          %s232 = smul.addr %s231, 8
          %s233 = scalar_lea.vmem %s3, %s232
        $region40: #{bert_attention.3} parent=31 // pred_fallthru
          _
      $region32: #{bert_attention.3} parent=5 // pred_fallthru
        _
      %p234 = scmp.le.s32.totalorder 1, %s16
      %p235 = scmp.lt.s32.totalorder %s16, 3
      %p236 = pnand %p234, %p235
      %p237 = pneg %p236
      // Predicated region
      $region41: #{bert_attention.3} parent=5 // pred_check
        _
      $region42: #{bert_attention.3} parent=5 // pred_check_branch
        %239 = sbr.rel (%p236) target = $region44
      $region43: #{bert_attention.3} parent=5 // pred_region
        %s240 = ssub.s32 %s16, 1
        // Predicated region
        $region45: #{bert_attention.3} parent=43 // pred_check
          %p241 = pneg %p63
        $region46: #{bert_attention.3} parent=43 // pred_check_branch
          %243 = sbr.rel (%p241) target = $region48
        $region47: #{bert_attention.3} parent=43 // pred_region
          %245 = dma.done [#allocation3], 512
        $region48: #{bert_attention.3} parent=43 // pred_fallthru
          _
        %p246 = scmp.lt.s32.totalorder %s21, 1
        %s247 = scalar_select %p246, %s21, 1
        %s248 = smul.addr %s247, 8
        %s249 = scalar_lea.vmem %s0, %s248
        %p250 = pneg %p42
        %p251 = pneg %p39
        %p252 = pneg %p63
        %p253 = pneg %p60
        %p254 = pneg %p84
        %p255 = pneg %p81
        %p256 = scmp.lt.s32.totalorder %s21, 1
        %s257 = scalar_select %p256, %s21, 1
        %s258 = smul.addr %s257, 8
        %s259 = scalar_lea.vmem %s3, %s258
        %p260 = pneg %p110
        %p261 = pneg %p107
        %p262 = pneg %p131
        %p263 = pneg %p128
        %p264 = pneg %p152
        %p265 = pneg %p149
        %p266 = pneg %p178
        %p267 = pneg %p175
        %s268 = sand.u32 %s165, 1
        %s269 = scalar_lea.sflag [#allocation4], %s268
        %s270 = sand.u32 %s165, 1
        %s271 = smul.addr %s270, 8
        %s272 = scalar_lea.vmem [#allocation5], %s271
        %p273 = scmp.lt.s32.totalorder %s21, 1
        %s274 = scalar_select %p273, %s21, 1
        %s275 = smul.addr %s274, 8
        %s276 = scalar_lea.vmem %s0, %s275
        %p277 = scmp.lt.s32.totalorder %s21, 1
        %s278 = scalar_select %p277, %s21, 1
        %s279 = smul.addr %s278, 8
        %s280 = scalar_lea.vmem %s3, %s279
        %v281 = vld [vmem:[%s276] sm:$0xff]
        %v282 = vld [vmem:[#allocation2] sm:$0xff]
        %v283 = vld [vmem:[#allocation2 + $0x8] sm:$0xff]
        %v284 = vld [vmem:[#allocation2 + $0x10] sm:$0xff]
        %v285 = vld [vmem:[#allocation2 + $0x18] sm:$0xff]
        %v286 = vld [vmem:[%s2] sm:$0x1]
        %v288 = vperm.slane %v286, 0
        %vm290 = vcmask 261120
        %v292 = vsel %vm290, %v281, 0
        %294 = vmatpush.msra.mxu0 0.0
        %295 = vmatpush.msra.mxu0 0.0
        %296 = vmatpush.msra.mxu0 0.0
        %297 = vmatpush.msra.mxu0 0.0
        %298 = vmatpush.msra.mxu0 0.0
        %299 = vmatpush.msra.mxu0 0.0
        %300 = vmatpush.msra.mxu0 0.0
        %301 = vmatpush.msra.mxu0 0.0
        %302 = vmatpush.msra.mxu0 0.0
        %303 = vmatpush.msra.mxu0 0.0
        %304 = vmatpush.msra.mxu0 0.0
        %305 = vmatpush.msra.mxu0 0.0
        %306 = vmatpush.msra.mxu0 %v285
        %307 = vmatpush.msra.mxu0 %v284
        %308 = vmatpush.msra.mxu0 %v283
        %309 = vmatpush.msra.mxu0 %v282
        %310 = vmatmul.f32.gmra.mxu0 %v292
        %v311 = vpop.f32.mrf.mxu0
        %v312 = vadd.f32 %v288, %v311
        %313 = vdwg.mxu0
        %v314 = vld [vmem:[%s280] sm:$0xff]
        %v315 = vadd.f32 %v312, %v314
        %v316 = vsel %vm290, %v315, 0.0
        %317 = vadd.xlane.f32.xlu0 %v316
        %v318 = vpop.xlane.xlu0 %317
        %v319 = vrcp.pop 32.0
        %v320 = vmul.f32 32.0, %v319
        %v321 = vsub.f32 1.0, %v320
        %v322 = vmul.f32 %v319, %v321
        %v323 = vadd.f32 %v319, %v322
        %vm324 = vweird.f32 %v319
        %v325 = vsel %vm324, %v319, %v323
        %v326 = vmul.f32 %v318, %v325
        %v327 = vsub.f32 %v315, %v326
        %v328 = vmul.f32 %v327, %v327
        %v329 = vsel %vm290, %v328, 0.0
        %330 = vadd.xlane.f32.xlu0 %v329
        %v331 = vpop.xlane.xlu0 %330
        %v332 = vmul.f32 %v331, %v325
        %v333 = vadd.f32 %v332, 1e-05
        %v334 = vrsqrt.pop %v333
        %v335 = vmul.f32 %v334, %v333
        %v336 = vmul.f32 %v335, %v334
        %v337 = vmul.f32 0.5, %v336
        %v338 = vsub.f32 1.5, %v337
        %v339 = vmul.f32 %v334, %v338
        %vm340 = vweird.f32 %v333
        %vm341 = vweird.f32 %v334
        %vm342 = vmor %vm340, %vm341
        %v343 = vsel %vm342, %v334, %v339
        %v344 = vmul.f32 %v327, %v343
        %v345 = vld [vmem:[%s4] sm:$0x1]
        %v347 = vperm.slane %v345, 0
        %v349 = vmul.f32 %v344, %v347
        %v350 = vld [vmem:[%s5] sm:$0x1]
        %v352 = vperm.slane %v350, 0
        %v354 = vadd.f32 %v349, %v352
        %355 = vst.msk [vmem:[%s272] sm:$0xff] %vm290, %v354
        %s356 = sand.u32 %s165, 1
        %s357 = scalar_lea.sflag [#allocation4], %s356
        %s358 = sand.u32 %s165, 1
        %s359 = smul.addr %s358, 8
        %s360 = scalar_lea.vmem [#allocation5], %s359
        // Predicated region
        $region49: #{bert_attention.3} parent=43 // pred_check
          %p361 = pneg %p175
        $region50: #{bert_attention.3} parent=43 // pred_check_branch
          %363 = sbr.rel (%p361) target = $region52
        $region51: #{bert_attention.3} parent=43 // pred_region
          %365 = vsyncadd %s357, 0
          %s366 = smul.addr %s21, 8
          %s367 = scalar_lea.hbm %s6, %s366
          %s369 = sshll.u32 %s360, 4
          %s370 = int_to_ptr.vmem [resolvable:$true] %s369
          %s371 = sshll.u32 %s367, 4
          %s372 = int_to_ptr.hbm [resolvable:$true] %s371
          %374 = dma.vmem_to_hbm [thread:$0]  %s370, 128, %s372, %s357
        $region52: #{bert_attention.3} parent=43 // pred_fallthru
          _
      $region44: #{bert_attention.3} parent=5 // pred_fallthru
        _
      %p375 = scmp.le.s32.totalorder 2, %s16
      // Predicated region
      $region53: #{bert_attention.3} parent=5 // pred_check
        %p376 = pneg %p375
      $region54: #{bert_attention.3} parent=5 // pred_check_branch
        %378 = sbr.rel (%p376) target = $region56
      $region55: #{bert_attention.3} parent=5 // pred_region
        %s379 = ssub.s32 %s16, 2
        // Predicated region
        $region57: #{bert_attention.3} parent=55 // pred_check
          %p380 = pneg %p181
        $region58: #{bert_attention.3} parent=55 // pred_check_branch
          %382 = sbr.rel (%p380) target = $region60
        $region59: #{bert_attention.3} parent=55 // pred_region
          %s383 = sand.u32 %s166, 1
          %s384 = scalar_lea.sflag [#allocation4], %s383
          %s385 = sand.u32 %s166, 1
          %s386 = smul.addr %s385, 8
          %s387 = scalar_lea.vmem [#allocation5], %s386
          %389 = dma.done %s384, 128
        $region60: #{bert_attention.3} parent=55 // pred_fallthru
          _
      $region56: #{bert_attention.3} parent=5 // pred_fallthru
        _
    $region6: #{bert_attention.3} parent=1 // loop_footer
      %s20 = sadd.s32 1, %s16
    $region7: #{bert_attention.3} parent=1 // loop_footer_branch
      %15 = sbr.rel target = $region3
    $region8: #{bert_attention.3} parent=1 // loop_exit
      _
    %390 = vsyncpa [#allocation3], 1
    %s391 = scalar_lea.sflag [#allocation3], 1
    %392 = vsyncpa %s391, 1
    %393 = vsyncpa [#allocation4], 1
    %s394 = scalar_lea.sflag [#allocation4], 1
    %395 = vsyncpa %s394, 1

</llo_original>
